<compile_context>
chip_gen: v7x
topology: tpu7x:2x2x1
jax: 0.10.0
libtpu: 0.0.40
codegen_flags: <defaults>
</compile_context>

<pallas_src>
import jax
import jax.numpy as jnp
from jax.experimental import pallas as pl
from jax.experimental.pallas import tpu as pltpu

EPS = 1e-5


def conv_stats_kernel(xp_ref, w_ref, b_ref, y_ref, sum_ref, ssq_ref):
    """Pass 1: 3x3 conv (+ bias) for one image + per-channel partial BN stats.

    xp_ref : (1, H+2, W+2, Cin)  bf16  zero-padded NHWC input tile
    w_ref  : (9*Cin, Cout)       bf16  im2col-ready weight (weight-stationary)
    b_ref  : (1, Cout)           f32   conv bias
    y_ref  : (1, H, W, Cout)     f32   conv+bias output tile
    sum_ref: (1, 1, Cout)        f32   per-image  sum_{h,w} y
    ssq_ref: (1, 1, Cout)        f32   per-image  sum_{h,w} y*y
    """
    _, Hp, Wp, Cin = xp_ref.shape
    H, W = Hp - 2, Wp - 2
    Cout = y_ref.shape[-1]
    M = H * W

    # Load the padded tile once (bf16 DMA), do the cheap slicing in f32.
    xp = xp_ref[0].astype(jnp.float32)                    # (H+2, W+2, Cin)

    # im2col: nine shifted views concatenated along the contraction axis so the
    # whole conv is a single matmul with K = 9*Cin (the patch footprint is the
    # price of the fused-K matmul; it is ~9x the input tile and sized per-tile).
    taps = []
    for dy in range(3):
        for dx in range(3):
            taps.append(xp[dy:dy + H, dx:dx + W, :].reshape(M, Cin))
    patch = jnp.concatenate(taps, axis=-1).astype(jnp.bfloat16)   # (M, 9*Cin)

    # Single MXU matmul, f32 accumulation.
    y = jnp.dot(patch, w_ref[...], preferred_element_type=jnp.float32)
    y = y + b_ref[...]                                    # (M, Cout) f32

    y_ref[...] = y.reshape(1, H, W, Cout)

    # Streaming BN statistics: O(Cout) per-tile state (partials combined in the
    # wrapper; keeps the conv streamable and removes a second full traversal).
    sum_ref[...] = jnp.sum(y, axis=0, keepdims=True).reshape(1, 1, Cout)
    ssq_ref[...] = jnp.sum(y * y, axis=0, keepdims=True).reshape(1, 1, Cout)


def bn_relu_kernel(y_ref, scale_ref, shift_ref, o_ref):
    """Pass 2: o = relu(y * scale + shift); scale/shift fold mean/var/gamma/beta."""
    Cout = o_ref.shape[-1]
    scale = scale_ref[...].reshape(1, 1, 1, Cout)
    shift = shift_ref[...].reshape(1, 1, 1, Cout)
    o_ref[...] = jnp.maximum(y_ref[...] * scale + shift, 0.0)


def conv2d_block(x_nchw, w_oihw, bias, gamma, beta, use_batch_norm=True):
    """Forward of Conv2dBlock: (N, Cin, H, W) -> (N, Cout, H, W)."""
    N, Cin, H, W = x_nchw.shape
    Cout = w_oihw.shape[0]

    # NCHW -> NHWC, bf16 cast, 1px zero pad: one fused HBM copy under jit.
    x_nhwc = jnp.transpose(x_nchw, (0, 2, 3, 1))
    xp = jnp.pad(x_nhwc, ((0, 0), (1, 1), (1, 1), (0, 0))).astype(jnp.bfloat16)

    # Weight: OIHW -> (ky, kx, Cin, Cout) -> single MXU-ready (9*Cin, Cout).
    w2d = (jnp.transpose(w_oihw, (2, 3, 1, 0))
           .reshape(9 * Cin, Cout).astype(jnp.bfloat16))
    b2 = bias.reshape(1, Cout).astype(jnp.float32)

    grid = (N,)
    parallel = pltpu.CompilerParams(dimension_semantics=("parallel",))

    y, s1, s2 = pl.pallas_call(
        conv_stats_kernel,
        out_shape=(
            jax.ShapeDtypeStruct((N, H, W, Cout), jnp.float32),
            jax.ShapeDtypeStruct((N, 1, Cout), jnp.float32),
            jax.ShapeDtypeStruct((N, 1, Cout), jnp.float32),
        ),
        grid=grid,
        in_specs=[
            pl.BlockSpec((1, H + 2, W + 2, Cin), lambda n: (n, 0, 0, 0)),
            pl.BlockSpec((9 * Cin, Cout), lambda n: (0, 0)),   # weight-stationary
            pl.BlockSpec((1, Cout), lambda n: (0, 0)),
        ],
        out_specs=(
            pl.BlockSpec((1, H, W, Cout), lambda n: (n, 0, 0, 0)),
            pl.BlockSpec((1, 1, Cout), lambda n: (n, 0, 0)),
            pl.BlockSpec((1, 1, Cout), lambda n: (n, 0, 0)),
        ),
        compiler_params=parallel,
    )(xp, w2d, b2)

    if use_batch_norm:
        # Combine per-image partials (tiny, O(N*Cout)).  PyTorch training-mode
        # BN: biased batch variance, eps=1e-5.  (E[y^2]-E[y]^2 in f32 is fine
        # at these magnitudes; clamp guards against tiny negative round-off.)
        m = N * H * W
        mean = jnp.sum(s1, axis=(0, 1)) / m                       # (Cout,)
        var = jnp.maximum(jnp.sum(s2, axis=(0, 1)) / m - mean * mean, 0.0)
        inv = jax.lax.rsqrt(var + EPS)
        scale = gamma.astype(jnp.float32) * inv
        shift = beta.astype(jnp.float32) - mean * scale
    else:
        scale = jnp.ones((Cout,), jnp.float32)
        shift = jnp.zeros((Cout,), jnp.float32)
    scale = scale.reshape(1, Cout)
    shift = shift.reshape(1, Cout)

    out_nhwc = pl.pallas_call(
        bn_relu_kernel,
        out_shape=jax.ShapeDtypeStruct((N, H, W, Cout), jnp.float32),
        grid=grid,
        in_specs=[
            pl.BlockSpec((1, H, W, Cout), lambda n: (n, 0, 0, 0)),
            pl.BlockSpec((1, Cout), lambda n: (0, 0)),
            pl.BlockSpec((1, Cout), lambda n: (0, 0)),
        ],
        out_specs=pl.BlockSpec((1, H, W, Cout), lambda n: (n, 0, 0, 0)),
        compiler_params=parallel,
    )(y, scale, shift)

    return jnp.transpose(out_nhwc, (0, 3, 1, 2))  # back to NCHW


def _reference(x_nchw, w_oihw, bias, gamma, beta):
    """Pure-JAX reference (XLA conv) replicating PyTorch Conv2d+BN(train)+ReLU."""
    y = jax.lax.conv_general_dilated(
        x_nchw, w_oihw, window_strides=(1, 1), padding=((1, 1), (1, 1)),
        dimension_numbers=("NCHW", "OIHW", "NCHW"))
    y = y + bias.reshape(1, -1, 1, 1)
    mean = jnp.mean(y, axis=(0, 2, 3), keepdims=True)
    var = jnp.mean((y - mean) ** 2, axis=(0, 2, 3), keepdims=True)
    y = (y - mean) * jax.lax.rsqrt(var + EPS)
    y = y * gamma.reshape(1, -1, 1, 1) + beta.reshape(1, -1, 1, 1)
    return jnp.maximum(y, 0.0)


if __name__ == "__main__":
    key = jax.random.PRNGKey(0)
    kx, kw, kb = jax.random.split(key, 3)

    N, Cin, H, W, Cout = 2, 4, 16, 16, 8

    x = jax.random.normal(kx, (N, Cin, H, W), jnp.float32)
    # Conv2d(in=4, out=8, k=3) parameters, deterministic synthetic init.
    w = jax.random.normal(kw, (Cout, Cin, 3, 3), jnp.float32) * 0.1
    b = jax.random.normal(kb, (Cout,), jnp.float32) * 0.1
    # BatchNorm2d default init: weight=1, bias=0.
    gamma = jnp.ones((Cout,), jnp.float32)
    beta = jnp.zeros((Cout,), jnp.float32)

    fwd = jax.jit(conv2d_block)
    out = fwd(x, w, b, gamma, beta)
    out = jax.block_until_ready(out)

    assert out.shape == (N, Cout, H, W)
    ref = _reference(x, w, b, gamma, beta)
    # bf16 MXU inputs (f32 accumulation) -> slightly looser tolerance than the
    # previous all-f32 pipeline.
    assert jnp.allclose(out, ref, atol=2e-2, rtol=2e-2), "mismatch vs reference"

    print("KERNEL_OK")
</pallas_src>

<mosaic_0001>
module attributes {stable_mosaic.version = 11 : i64} {
  func.func @conv_stats_kernel(%arg0: i32, %arg1: memref<1x18x18x4xbf16, #tpu.memory_space<vmem>>, %arg2: memref<36x8xbf16, #tpu.memory_space<vmem>>, %arg3: memref<1x8xf32, #tpu.memory_space<vmem>>, %arg4: memref<1x16x16x8xf32, #tpu.memory_space<vmem>>, %arg5: memref<1x1x8xf32, #tpu.memory_space<vmem>>, %arg6: memref<1x1x8xf32, #tpu.memory_space<vmem>>) attributes {dimension_semantics = [#tpu.dimension_semantics<parallel>], iteration_bounds = array<i64: 2>, scalar_prefetch = 0 : i64, scratch_operands = 0 : i64, tpu.core_type = #tpu.core_type<tc>, window_params = [{transform_indices = @transform_0, window_bounds = array<i64: 1, 18, 18, 4>}, {pipeline_mode = #tpu.pipeline_mode<synchronous>, transform_indices = @transform_1, window_bounds = array<i64: 36, 8>}, {pipeline_mode = #tpu.pipeline_mode<synchronous>, transform_indices = @transform_2, window_bounds = array<i64: 1, 8>}, {transform_indices = @transform_3, window_bounds = array<i64: 1, 16, 16, 8>}, {transform_indices = @transform_4, window_bounds = array<i64: 1, 1, 8>}, {transform_indices = @transform_5, window_bounds = array<i64: 1, 1, 8>}]} {
    %c0 = arith.constant 0 : index
    %c0_0 = arith.constant 0 : index
    %c0_1 = arith.constant 0 : index
    %c0_2 = arith.constant 0 : index
    %0 = vector.load %arg1[%c0, %c0_0, %c0_1, %c0_2] : memref<1x18x18x4xbf16, #tpu.memory_space<vmem>>, vector<1x18x18x4xbf16>
    %1 = vector.shape_cast %0 : vector<1x18x18x4xbf16> to vector<18x18x4xbf16>
    %2 = arith.extf %1 : vector<18x18x4xbf16> to vector<18x18x4xf32>
    %3 = vector.extract_strided_slice %2 {offsets = [0, 0, 0], sizes = [16, 16, 4], strides = [1, 1, 1]} : vector<18x18x4xf32> to vector<16x16x4xf32>
    %4 = vector.shape_cast %3 : vector<16x16x4xf32> to vector<256x4xf32>
    %5 = vector.extract_strided_slice %2 {offsets = [0, 1, 0], sizes = [16, 16, 4], strides = [1, 1, 1]} : vector<18x18x4xf32> to vector<16x16x4xf32>
    %6 = vector.shape_cast %5 : vector<16x16x4xf32> to vector<256x4xf32>
    %7 = vector.extract_strided_slice %2 {offsets = [0, 2, 0], sizes = [16, 16, 4], strides = [1, 1, 1]} : vector<18x18x4xf32> to vector<16x16x4xf32>
    %8 = vector.shape_cast %7 : vector<16x16x4xf32> to vector<256x4xf32>
    %9 = vector.extract_strided_slice %2 {offsets = [1, 0, 0], sizes = [16, 16, 4], strides = [1, 1, 1]} : vector<18x18x4xf32> to vector<16x16x4xf32>
    %10 = vector.shape_cast %9 : vector<16x16x4xf32> to vector<256x4xf32>
    %11 = vector.extract_strided_slice %2 {offsets = [1, 1, 0], sizes = [16, 16, 4], strides = [1, 1, 1]} : vector<18x18x4xf32> to vector<16x16x4xf32>
    %12 = vector.shape_cast %11 : vector<16x16x4xf32> to vector<256x4xf32>
    %13 = vector.extract_strided_slice %2 {offsets = [1, 2, 0], sizes = [16, 16, 4], strides = [1, 1, 1]} : vector<18x18x4xf32> to vector<16x16x4xf32>
    %14 = vector.shape_cast %13 : vector<16x16x4xf32> to vector<256x4xf32>
    %15 = vector.extract_strided_slice %2 {offsets = [2, 0, 0], sizes = [16, 16, 4], strides = [1, 1, 1]} : vector<18x18x4xf32> to vector<16x16x4xf32>
    %16 = vector.shape_cast %15 : vector<16x16x4xf32> to vector<256x4xf32>
    %17 = vector.extract_strided_slice %2 {offsets = [2, 1, 0], sizes = [16, 16, 4], strides = [1, 1, 1]} : vector<18x18x4xf32> to vector<16x16x4xf32>
    %18 = vector.shape_cast %17 : vector<16x16x4xf32> to vector<256x4xf32>
    %19 = vector.extract_strided_slice %2 {offsets = [2, 2, 0], sizes = [16, 16, 4], strides = [1, 1, 1]} : vector<18x18x4xf32> to vector<16x16x4xf32>
    %20 = vector.shape_cast %19 : vector<16x16x4xf32> to vector<256x4xf32>
    %21 = tpu.concatenate %4, %6, %8, %10, %12, %14, %16, %18, %20 in 1 : vector<256x4xf32>, vector<256x4xf32>, vector<256x4xf32>, vector<256x4xf32>, vector<256x4xf32>, vector<256x4xf32>, vector<256x4xf32>, vector<256x4xf32>, vector<256x4xf32> -> vector<256x36xf32>
    %22 = arith.truncf %21 : vector<256x36xf32> to vector<256x36xbf16>
    %c0_3 = arith.constant 0 : index
    %c0_4 = arith.constant 0 : index
    %23 = vector.load %arg2[%c0_3, %c0_4] : memref<36x8xbf16, #tpu.memory_space<vmem>>, vector<36x8xbf16>
    %cst = arith.constant dense<0.000000e+00> : vector<256x8xf32>
    %24 = tpu.matmul %22, %23, %cst {dimension_numbers = #tpu.dot_dimension_numbers<[1], [0], [0], [1], [0, 0, 1, 1], [], []>} : vector<256x36xbf16>, vector<36x8xbf16>, vector<256x8xf32> -> vector<256x8xf32>
    %c0_5 = arith.constant 0 : index
    %c0_6 = arith.constant 0 : index
    %25 = vector.load %arg3[%c0_5, %c0_6] : memref<1x8xf32, #tpu.memory_space<vmem>>, vector<1x8xf32>
    %26 = vector.broadcast %25 : vector<1x8xf32> to vector<256x8xf32>
    %27 = arith.addf %24, %26 : vector<256x8xf32>
    %28 = vector.shape_cast %27 : vector<256x8xf32> to vector<1x16x16x8xf32>
    %c0_7 = arith.constant 0 : index
    %c0_8 = arith.constant 0 : index
    %c0_9 = arith.constant 0 : index
    %c0_10 = arith.constant 0 : index
    %29 = vector.load %arg4[%c0_7, %c0_8, %c0_9, %c0_10] : memref<1x16x16x8xf32, #tpu.memory_space<vmem>>, vector<1x16x16x8xf32>
    tpu.vector_store %arg4[%c0_7, %c0_8, %c0_9, %c0_10], %28 {strides = array<i32>} : memref<1x16x16x8xf32, #tpu.memory_space<vmem>>, vector<1x16x16x8xf32>,
    %cst_11 = arith.constant dense<0.000000e+00> : vector<8xf32>
    %30 = vector.multi_reduction <add>, %27, %cst_11 [0] : vector<256x8xf32> to vector<8xf32>
    %31 = vector.shape_cast %30 : vector<8xf32> to vector<1x8xf32>
    %32 = vector.shape_cast %31 : vector<1x8xf32> to vector<1x1x8xf32>
    %c0_12 = arith.constant 0 : index
    %c0_13 = arith.constant 0 : index
    %c0_14 = arith.constant 0 : index
    %33 = vector.load %arg5[%c0_12, %c0_13, %c0_14] : memref<1x1x8xf32, #tpu.memory_space<vmem>>, vector<1x1x8xf32>
    tpu.vector_store %arg5[%c0_12, %c0_13, %c0_14], %32 {strides = array<i32>} : memref<1x1x8xf32, #tpu.memory_space<vmem>>, vector<1x1x8xf32>,
    %34 = arith.mulf %27, %27 : vector<256x8xf32>
    %cst_15 = arith.constant dense<0.000000e+00> : vector<8xf32>
    %35 = vector.multi_reduction <add>, %34, %cst_15 [0] : vector<256x8xf32> to vector<8xf32>
    %36 = vector.shape_cast %35 : vector<8xf32> to vector<1x8xf32>
    %37 = vector.shape_cast %36 : vector<1x8xf32> to vector<1x1x8xf32>
    %c0_16 = arith.constant 0 : index
    %c0_17 = arith.constant 0 : index
    %c0_18 = arith.constant 0 : index
    %38 = vector.load %arg6[%c0_16, %c0_17, %c0_18] : memref<1x1x8xf32, #tpu.memory_space<vmem>>, vector<1x1x8xf32>
    tpu.vector_store %arg6[%c0_16, %c0_17, %c0_18], %37 {strides = array<i32>} : memref<1x1x8xf32, #tpu.memory_space<vmem>>, vector<1x1x8xf32>,
    return
  }
  func.func @transform_0(%arg0: i32) -> (i32, i32, i32, i32) {
    %c0_i32 = arith.constant 0 : i32
    %c0_i32_0 = arith.constant 0 : i32
    %c0_i32_1 = arith.constant 0 : i32
    %c0_i32_2 = arith.constant 0 : i32
    return %arg0, %c0_i32, %c0_i32_0, %c0_i32_1 : i32, i32, i32, i32
  }
  func.func @transform_1(%arg0: i32) -> (i32, i32) {
    %c0_i32 = arith.constant 0 : i32
    %c0_i32_0 = arith.constant 0 : i32
    %c0_i32_1 = arith.constant 0 : i32
    return %c0_i32, %c0_i32_0 : i32, i32
  }
  func.func @transform_2(%arg0: i32) -> (i32, i32) {
    %c0_i32 = arith.constant 0 : i32
    %c0_i32_0 = arith.constant 0 : i32
    %c0_i32_1 = arith.constant 0 : i32
    return %c0_i32, %c0_i32_0 : i32, i32
  }
  func.func @transform_3(%arg0: i32) -> (i32, i32, i32, i32) {
    %c0_i32 = arith.constant 0 : i32
    %c0_i32_0 = arith.constant 0 : i32
    %c0_i32_1 = arith.constant 0 : i32
    %c0_i32_2 = arith.constant 0 : i32
    return %arg0, %c0_i32, %c0_i32_0, %c0_i32_1 : i32, i32, i32, i32
  }
  func.func @transform_4(%arg0: i32) -> (i32, i32, i32) {
    %c0_i32 = arith.constant 0 : i32
    %c0_i32_0 = arith.constant 0 : i32
    %c0_i32_1 = arith.constant 0 : i32
    return %arg0, %c0_i32, %c0_i32_0 : i32, i32, i32
  }
  func.func @transform_5(%arg0: i32) -> (i32, i32, i32) {
    %c0_i32 = arith.constant 0 : i32
    %c0_i32_0 = arith.constant 0 : i32
    %c0_i32_1 = arith.constant 0 : i32
    return %arg0, %c0_i32, %c0_i32_0 : i32, i32, i32
  }
}

module attributes {stable_mosaic.version = 11 : i64} {
  func.func @bn_relu_kernel(%arg0: i32, %arg1: memref<1x16x16x8xf32, #tpu.memory_space<vmem>>, %arg2: memref<1x8xf32, #tpu.memory_space<vmem>>, %arg3: memref<1x8xf32, #tpu.memory_space<vmem>>, %arg4: memref<1x16x16x8xf32, #tpu.memory_space<vmem>>) attributes {dimension_semantics = [#tpu.dimension_semantics<parallel>], iteration_bounds = array<i64: 2>, scalar_prefetch = 0 : i64, scratch_operands = 0 : i64, tpu.core_type = #tpu.core_type<tc>, window_params = [{transform_indices = @transform_0, window_bounds = array<i64: 1, 16, 16, 8>}, {pipeline_mode = #tpu.pipeline_mode<synchronous>, transform_indices = @transform_1, window_bounds = array<i64: 1, 8>}, {pipeline_mode = #tpu.pipeline_mode<synchronous>, transform_indices = @transform_2, window_bounds = array<i64: 1, 8>}, {transform_indices = @transform_3, window_bounds = array<i64: 1, 16, 16, 8>}]} {
    %c0 = arith.constant 0 : index
    %c0_0 = arith.constant 0 : index
    %0 = vector.load %arg2[%c0, %c0_0] : memref<1x8xf32, #tpu.memory_space<vmem>>, vector<1x8xf32>
    %1 = vector.shape_cast %0 : vector<1x8xf32> to vector<1x1x1x8xf32>
    %c0_1 = arith.constant 0 : index
    %c0_2 = arith.constant 0 : index
    %2 = vector.load %arg3[%c0_1, %c0_2] : memref<1x8xf32, #tpu.memory_space<vmem>>, vector<1x8xf32>
    %3 = vector.shape_cast %2 : vector<1x8xf32> to vector<1x1x1x8xf32>
    %c0_3 = arith.constant 0 : index
    %c0_4 = arith.constant 0 : index
    %c0_5 = arith.constant 0 : index
    %c0_6 = arith.constant 0 : index
    %4 = vector.load %arg1[%c0_3, %c0_4, %c0_5, %c0_6] : memref<1x16x16x8xf32, #tpu.memory_space<vmem>>, vector<1x16x16x8xf32>
    %5 = vector.broadcast %1 : vector<1x1x1x8xf32> to vector<1x16x16x8xf32>
    %6 = arith.mulf %4, %5 : vector<1x16x16x8xf32>
    %7 = vector.broadcast %3 : vector<1x1x1x8xf32> to vector<1x16x16x8xf32>
    %8 = arith.addf %6, %7 : vector<1x16x16x8xf32>
    %cst = arith.constant 0.000000e+00 : f32
    %9 = vector.broadcast %cst : f32 to vector<1x16x16x8xf32>
    %10 = arith.maximumf %8, %9 : vector<1x16x16x8xf32>
    %c0_7 = arith.constant 0 : index
    %c0_8 = arith.constant 0 : index
    %c0_9 = arith.constant 0 : index
    %c0_10 = arith.constant 0 : index
    %11 = vector.load %arg4[%c0_7, %c0_8, %c0_9, %c0_10] : memref<1x16x16x8xf32, #tpu.memory_space<vmem>>, vector<1x16x16x8xf32>
    tpu.vector_store %arg4[%c0_7, %c0_8, %c0_9, %c0_10], %10 {strides = array<i32>} : memref<1x16x16x8xf32, #tpu.memory_space<vmem>>, vector<1x16x16x8xf32>,
    return
  }
  func.func @transform_0(%arg0: i32) -> (i32, i32, i32, i32) {
    %c0_i32 = arith.constant 0 : i32
    %c0_i32_0 = arith.constant 0 : i32
    %c0_i32_1 = arith.constant 0 : i32
    %c0_i32_2 = arith.constant 0 : i32
    return %arg0, %c0_i32, %c0_i32_0, %c0_i32_1 : i32, i32, i32, i32
  }
  func.func @transform_1(%arg0: i32) -> (i32, i32) {
    %c0_i32 = arith.constant 0 : i32
    %c0_i32_0 = arith.constant 0 : i32
    %c0_i32_1 = arith.constant 0 : i32
    return %c0_i32, %c0_i32_0 : i32, i32
  }
  func.func @transform_2(%arg0: i32) -> (i32, i32) {
    %c0_i32 = arith.constant 0 : i32
    %c0_i32_0 = arith.constant 0 : i32
    %c0_i32_1 = arith.constant 0 : i32
    return %c0_i32, %c0_i32_0 : i32, i32
  }
  func.func @transform_3(%arg0: i32) -> (i32, i32, i32, i32) {
    %c0_i32 = arith.constant 0 : i32
    %c0_i32_0 = arith.constant 0 : i32
    %c0_i32_1 = arith.constant 0 : i32
    %c0_i32_2 = arith.constant 0 : i32
    return %arg0, %c0_i32, %c0_i32_0, %c0_i32_1 : i32, i32, i32, i32
  }
}

</mosaic_0001>

<llo_original>
// kernel: conv2d_block.3
$region0: #{conv2d_block.3}
  #allocation0 [shape = 'u32[]', space=smem, size = 0x4, offset = 0x4, fixed_abs, tag = 'smem constant byte address 0x4 - core index']
  #allocation1 [shape = 'u32[144,128]{1,0:T(1,128)}', space=vmem, size = 0x12000, scoped, tag = 'internal scratch']
  %s0 = inlined_call_operand.vmem [shape: f32[2,16,16,8], index: 0, kind: input, shape index: {}]
  %s1 = inlined_call_operand.vmem [shape: f32[1,8], index: 1, kind: input, shape index: {}]
  %s2 = inlined_call_operand.vmem [shape: f32[1,8], index: 2, kind: input, shape index: {}]
  %s3 = inlined_call_operand.vmem [shape: f32[2,16,16,8], index: 3, kind: output, shape index: {}]
  %s4 = sld [smem:[#allocation0]]
  $region45: #{conv2d_block.3} parent=0
    _
  %s6 = ssub.s32 1, %s4
  %s7 = scalar_select 0, %s6, %s4
  loop: start=0, step=1, limit=4
  $region2: #{conv2d_block.3} parent=0 // loop_pre_header
    _
  $region3: #{conv2d_block.3} parent=0 // loop_header
    %s9 = sphi 0, %s13
    %p10 = scmp.ge.s32.totalorder %s9, 4
    %s19 = sphi 0, %s21
    %s22 = sphi 0, %s19
    %s23 = sphi 0, %s22
    %s39 = sphi 0, %s23
    %s43 = sphi 0, %s43
    %s45 = sphi 0, %s43
    %s46 = sphi 0, %s45
    %s60 = sphi 0, %s46
    %s64 = sphi 0, %s64
    %s66 = sphi 0, %s64
    %s67 = sphi 0, %s66
    %s81 = sphi 0, %s67
    %s87 = sphi 0, %s89
    %s90 = sphi 0, %s87
    %s91 = sphi 0, %s90
    %s107 = sphi 0, %s91
  $region4: #{conv2d_block.3} parent=0 // loop_header_branch
    %12 = sbr.rel (%p10) target = $region8
  $region5: #{conv2d_block.3} parent=0 // loop_body
    %s14 = ssub.s32 %s9, 1
    %s15 = ssub.s32 %s9, 2
    %s16 = sadd.s32 %s9, 1
    %s17 = ssub.s32 %s9, %s16
    %p18 = scmp.eq.s32.totalorder %s17, 0
    %s20 = sadd.s32 %s19, 1
    %s21 = scalar_select %p18, %s19, %s20
    %p24 = pneg %p18
    %p25 = scmp.eq.s32.totalorder %s9, 1
    %p26 = por %p24, %p25
    %p27 = scmp.ne.s32.totalorder %s19, %s22
    %p28 = scmp.eq.s32.totalorder %s9, 0
    %p29 = por %p27, %p28
    %p30 = scmp.ne.s32.totalorder %s19, %s22
    %p31 = scmp.eq.s32.totalorder %s14, 1
    %p32 = por %p30, %p31
    %p33 = scmp.ne.s32.totalorder %s22, %s23
    %p34 = scmp.eq.s32.totalorder %s14, 0
    %p35 = por %p33, %p34
    %p36 = scmp.ne.s32.totalorder %s22, %s23
    %p37 = scmp.eq.s32.totalorder %s15, 1
    %p38 = por %p36, %p37
    %p40 = scmp.ne.s32.totalorder %s23, %s39
    %p41 = scmp.eq.s32.totalorder %s15, 0
    %p42 = por %p40, %p41
    %s44 = sadd.s32 %s43, 1
    %p47 = scmp.eq.s32.totalorder %s9, 1
    %p48 = scmp.ne.s32.totalorder %s43, %s45
    %p49 = scmp.eq.s32.totalorder %s9, 0
    %p50 = por %p48, %p49
    %p51 = scmp.ne.s32.totalorder %s43, %s45
    %p52 = scmp.eq.s32.totalorder %s14, 1
    %p53 = por %p51, %p52
    %p54 = scmp.ne.s32.totalorder %s45, %s46
    %p55 = scmp.eq.s32.totalorder %s14, 0
    %p56 = por %p54, %p55
    %p57 = scmp.ne.s32.totalorder %s45, %s46
    %p58 = scmp.eq.s32.totalorder %s15, 1
    %p59 = por %p57, %p58
    %p61 = scmp.ne.s32.totalorder %s46, %s60
    %p62 = scmp.eq.s32.totalorder %s15, 0
    %p63 = por %p61, %p62
    %s65 = sadd.s32 %s64, 1
    %p68 = scmp.eq.s32.totalorder %s9, 1
    %p69 = scmp.ne.s32.totalorder %s64, %s66
    %p70 = scmp.eq.s32.totalorder %s9, 0
    %p71 = por %p69, %p70
    %p72 = scmp.ne.s32.totalorder %s64, %s66
    %p73 = scmp.eq.s32.totalorder %s14, 1
    %p74 = por %p72, %p73
    %p75 = scmp.ne.s32.totalorder %s66, %s67
    %p76 = scmp.eq.s32.totalorder %s14, 0
    %p77 = por %p75, %p76
    %p78 = scmp.ne.s32.totalorder %s66, %s67
    %p79 = scmp.eq.s32.totalorder %s15, 1
    %p80 = por %p78, %p79
    %p82 = scmp.ne.s32.totalorder %s67, %s81
    %p83 = scmp.eq.s32.totalorder %s15, 0
    %p84 = por %p82, %p83
    %s85 = ssub.s32 %s9, %s16
    %p86 = scmp.eq.s32.totalorder %s85, 0
    %s88 = sadd.s32 %s87, 1
    %s89 = scalar_select %p86, %s87, %s88
    %p92 = pneg %p86
    %p93 = scmp.eq.s32.totalorder %s9, 1
    %p94 = por %p92, %p93
    %p95 = scmp.ne.s32.totalorder %s87, %s90
    %p96 = scmp.eq.s32.totalorder %s9, 0
    %p97 = por %p95, %p96
    %p98 = scmp.ne.s32.totalorder %s87, %s90
    %p99 = scmp.eq.s32.totalorder %s14, 1
    %p100 = por %p98, %p99
    %p101 = scmp.ne.s32.totalorder %s90, %s91
    %p102 = scmp.eq.s32.totalorder %s14, 0
    %p103 = por %p101, %p102
    %p104 = scmp.ne.s32.totalorder %s90, %s91
    %p105 = scmp.eq.s32.totalorder %s15, 1
    %p106 = por %p104, %p105
    %p108 = scmp.ne.s32.totalorder %s91, %s107
    %p109 = scmp.eq.s32.totalorder %s15, 0
    %p110 = por %p108, %p109
    %p111 = scmp.le.s32.totalorder 1, %s9
    %p112 = scmp.lt.s32.totalorder %s9, 3
    %p113 = pnand %p111, %p112
    %p114 = pneg %p113
    // Predicated region
    $region9: #{conv2d_block.3} parent=5 // pred_check
      _
    $region10: #{conv2d_block.3} parent=5 // pred_check_branch
      %116 = sbr.rel (%p113) target = $region12
    $region11: #{conv2d_block.3} parent=5 // pred_region
      %s117 = ssub.s32 %s9, 1
      // Predicated region
      $region13: #{conv2d_block.3} parent=11 // pred_check
        %p118 = pneg %p56
      $region14: #{conv2d_block.3} parent=11 // pred_check_branch
        %120 = sbr.rel (%p118) target = $region16
      $region15: #{conv2d_block.3} parent=11 // pred_region
        _
      $region16: #{conv2d_block.3} parent=11 // pred_fallthru
        _
      // Predicated region
      $region17: #{conv2d_block.3} parent=11 // pred_check
        %p121 = pneg %p77
      $region18: #{conv2d_block.3} parent=11 // pred_check_branch
        %123 = sbr.rel (%p121) target = $region20
      $region19: #{conv2d_block.3} parent=11 // pred_region
        _
      $region20: #{conv2d_block.3} parent=11 // pred_fallthru
        _
    $region12: #{conv2d_block.3} parent=5 // pred_fallthru
      _
    %p124 = scmp.lt.s32.totalorder %s9, 2
    // Predicated region
    $region21: #{conv2d_block.3} parent=5 // pred_check
      %p125 = pneg %p124
    $region22: #{conv2d_block.3} parent=5 // pred_check_branch
      %127 = sbr.rel (%p125) target = $region24
    $region23: #{conv2d_block.3} parent=5 // pred_region
      // Predicated region
      $region25: #{conv2d_block.3} parent=23 // pred_check
        %p128 = pneg %p29
      $region26: #{conv2d_block.3} parent=23 // pred_check_branch
        %130 = sbr.rel (%p128) target = $region28
      $region27: #{conv2d_block.3} parent=23 // pred_region
        %p131 = scmp.lt.s32.totalorder %s9, 1
        %s132 = scalar_select %p131, %s9, 1
        %s133 = smul.addr %s132, 32
        %s134 = smul.addr %s133, 8
        %s135 = scalar_lea.vmem %s0, %s134
      $region28: #{conv2d_block.3} parent=23 // pred_fallthru
        _
    $region24: #{conv2d_block.3} parent=5 // pred_fallthru
      _
    %p136 = scmp.le.s32.totalorder 1, %s9
    %p137 = scmp.lt.s32.totalorder %s9, 3
    %p138 = pnand %p136, %p137
    %p139 = pneg %p138
    // Predicated region
    $region29: #{conv2d_block.3} parent=5 // pred_check
      _
    $region30: #{conv2d_block.3} parent=5 // pred_check_branch
      %141 = sbr.rel (%p138) target = $region32
    $region31: #{conv2d_block.3} parent=5 // pred_region
      %s142 = ssub.s32 %s9, 1
      %p143 = scmp.lt.s32.totalorder %s14, 1
      %s144 = scalar_select %p143, %s14, 1
      %s145 = smul.addr %s144, 32
      %s146 = smul.addr %s145, 8
      %s147 = scalar_lea.vmem %s0, %s146
      %p148 = pneg %p35
      %p149 = pneg %p32
      %p150 = pneg %p56
      %p151 = pneg %p53
      %p152 = pneg %p77
      %p153 = pneg %p74
      %p154 = pneg %p103
      %p155 = pneg %p100
      %p156 = scmp.lt.s32.totalorder %s14, 1
      %s157 = scalar_select %p156, %s14, 1
      %s158 = smul.addr %s157, 32
      %s159 = smul.addr %s158, 8
      %s160 = scalar_lea.vmem %s3, %s159
      %p161 = scmp.lt.s32.totalorder %s14, 1
      %s162 = scalar_select %p161, %s14, 1
      %s163 = smul.addr %s162, 32
      %s164 = smul.addr %s163, 8
      %s165 = scalar_lea.vmem %s0, %s164
      %p166 = scmp.lt.s32.totalorder %s14, 1
      %s167 = scalar_select %p166, %s14, 1
      %s168 = smul.addr %s167, 32
      %s169 = smul.addr %s168, 8
      %s170 = scalar_lea.vmem %s3, %s169
      %v171 = vld [vmem:[%s1] sm:$0x1]
      %v172 = vld [vmem:[%s2] sm:$0x1]
      %v173 = vld [vmem:[%s165] sm:$0xff]
      %v174 = vld [vmem:[%s165 + $0x8] sm:$0xff]
      %v175 = vld [vmem:[%s165 + $0x10] sm:$0xff]
      %v176 = vld [vmem:[%s165 + $0x18] sm:$0xff]
      %v177 = vld [vmem:[%s165 + $0x20] sm:$0xff]
      %v178 = vld [vmem:[%s165 + $0x28] sm:$0xff]
      %v179 = vld [vmem:[%s165 + $0x30] sm:$0xff]
      %v180 = vld [vmem:[%s165 + $0x38] sm:$0xff]
      %v181 = vld [vmem:[%s165 + $0x40] sm:$0xff]
      %v182 = vld [vmem:[%s165 + $0x48] sm:$0xff]
      %v183 = vld [vmem:[%s165 + $0x50] sm:$0xff]
      %v184 = vld [vmem:[%s165 + $0x58] sm:$0xff]
      %v185 = vld [vmem:[%s165 + $0x60] sm:$0xff]
      %v186 = vld [vmem:[%s165 + $0x68] sm:$0xff]
      %v187 = vld [vmem:[%s165 + $0x70] sm:$0xff]
      %v188 = vld [vmem:[%s165 + $0x78] sm:$0xff]
      %v189 = vld [vmem:[%s165 + $0x80] sm:$0xff]
      %v190 = vld [vmem:[%s165 + $0x88] sm:$0xff]
      %v191 = vld [vmem:[%s165 + $0x90] sm:$0xff]
      %v192 = vld [vmem:[%s165 + $0x98] sm:$0xff]
      %v193 = vld [vmem:[%s165 + $0xa0] sm:$0xff]
      %v194 = vld [vmem:[%s165 + $0xa8] sm:$0xff]
      %v195 = vld [vmem:[%s165 + $0xb0] sm:$0xff]
      %v196 = vld [vmem:[%s165 + $0xb8] sm:$0xff]
      %v197 = vld [vmem:[%s165 + $0xc0] sm:$0xff]
      %v198 = vld [vmem:[%s165 + $0xc8] sm:$0xff]
      %v199 = vld [vmem:[%s165 + $0xd0] sm:$0xff]
      %v200 = vld [vmem:[%s165 + $0xd8] sm:$0xff]
      %v201 = vld [vmem:[%s165 + $0xe0] sm:$0xff]
      %v202 = vld [vmem:[%s165 + $0xe8] sm:$0xff]
      %v203 = vld [vmem:[%s165 + $0xf0] sm:$0xff]
      %v204 = vld [vmem:[%s165 + $0xf8] sm:$0xff]
      %v206 = vlaneseq
      %v207 = vshrl.u32 %v206, 7
      %v208 = vsub.s32 0, %v207
      %v209 = vrot.slane %v171, %v208
      %v211 = vmul.f32 %v173, %v209
      %v212 = vmul.f32 %v174, %v209
      %v213 = vmul.f32 %v175, %v209
      %v214 = vmul.f32 %v176, %v209
      %v215 = vmul.f32 %v177, %v209
      %v216 = vmul.f32 %v178, %v209
      %v217 = vmul.f32 %v179, %v209
      %v218 = vmul.f32 %v180, %v209
      %v219 = vmul.f32 %v181, %v209
      %v220 = vmul.f32 %v182, %v209
      %v221 = vmul.f32 %v183, %v209
      %v222 = vmul.f32 %v184, %v209
      %v223 = vmul.f32 %v185, %v209
      %v224 = vmul.f32 %v186, %v209
      %v225 = vmul.f32 %v187, %v209
      %v226 = vmul.f32 %v188, %v209
      %v227 = vmul.f32 %v189, %v209
      %v228 = vmul.f32 %v190, %v209
      %v229 = vmul.f32 %v191, %v209
      %v230 = vmul.f32 %v192, %v209
      %v231 = vmul.f32 %v193, %v209
      %v232 = vmul.f32 %v194, %v209
      %v233 = vmul.f32 %v195, %v209
      %v234 = vmul.f32 %v196, %v209
      %v235 = vmul.f32 %v197, %v209
      %v236 = vmul.f32 %v198, %v209
      %v237 = vmul.f32 %v199, %v209
      %v238 = vmul.f32 %v200, %v209
      %v239 = vmul.f32 %v201, %v209
      %v240 = vmul.f32 %v202, %v209
      %v241 = vmul.f32 %v203, %v209
      %v242 = vmul.f32 %v204, %v209
      %v244 = vlaneseq
      %v245 = vshrl.u32 %v244, 7
      %v246 = vsub.s32 0, %v245
      %v247 = vrot.slane %v172, %v246
      %v249 = vadd.f32 %v211, %v247
      %v250 = vadd.f32 %v212, %v247
      %v251 = vadd.f32 %v213, %v247
      %v252 = vadd.f32 %v214, %v247
      %v253 = vadd.f32 %v215, %v247
      %v254 = vadd.f32 %v216, %v247
      %v255 = vadd.f32 %v217, %v247
      %v256 = vadd.f32 %v218, %v247
      %v257 = vadd.f32 %v219, %v247
      %v258 = vadd.f32 %v220, %v247
      %v259 = vadd.f32 %v221, %v247
      %v260 = vadd.f32 %v222, %v247
      %v261 = vadd.f32 %v223, %v247
      %v262 = vadd.f32 %v224, %v247
      %v263 = vadd.f32 %v225, %v247
      %v264 = vadd.f32 %v226, %v247
      %v265 = vadd.f32 %v227, %v247
      %v266 = vadd.f32 %v228, %v247
      %v267 = vadd.f32 %v229, %v247
      %v268 = vadd.f32 %v230, %v247
      %v269 = vadd.f32 %v231, %v247
      %v270 = vadd.f32 %v232, %v247
      %v271 = vadd.f32 %v233, %v247
      %v272 = vadd.f32 %v234, %v247
      %v273 = vadd.f32 %v235, %v247
      %v274 = vadd.f32 %v236, %v247
      %v275 = vadd.f32 %v237, %v247
      %v276 = vadd.f32 %v238, %v247
      %v277 = vadd.f32 %v239, %v247
      %v278 = vadd.f32 %v240, %v247
      %v279 = vadd.f32 %v241, %v247
      %v280 = vadd.f32 %v242, %v247
      %v281 = vmax.f32 %v249, 0.0
      %v282 = vmax.f32 %v250, 0.0
      %v283 = vmax.f32 %v251, 0.0
      %v284 = vmax.f32 %v252, 0.0
      %v285 = vmax.f32 %v253, 0.0
      %v286 = vmax.f32 %v254, 0.0
      %v287 = vmax.f32 %v255, 0.0
      %v288 = vmax.f32 %v256, 0.0
      %v289 = vmax.f32 %v257, 0.0
      %v290 = vmax.f32 %v258, 0.0
      %v291 = vmax.f32 %v259, 0.0
      %v292 = vmax.f32 %v260, 0.0
      %v293 = vmax.f32 %v261, 0.0
      %v294 = vmax.f32 %v262, 0.0
      %v295 = vmax.f32 %v263, 0.0
      %v296 = vmax.f32 %v264, 0.0
      %v297 = vmax.f32 %v265, 0.0
      %v298 = vmax.f32 %v266, 0.0
      %v299 = vmax.f32 %v267, 0.0
      %v300 = vmax.f32 %v268, 0.0
      %v301 = vmax.f32 %v269, 0.0
      %v302 = vmax.f32 %v270, 0.0
      %v303 = vmax.f32 %v271, 0.0
      %v304 = vmax.f32 %v272, 0.0
      %v305 = vmax.f32 %v273, 0.0
      %v306 = vmax.f32 %v274, 0.0
      %v307 = vmax.f32 %v275, 0.0
      %v308 = vmax.f32 %v276, 0.0
      %v309 = vmax.f32 %v277, 0.0
      %v310 = vmax.f32 %v278, 0.0
      %v311 = vmax.f32 %v279, 0.0
      %v312 = vmax.f32 %v280, 0.0
      %vm313 = vcmask 64512
      %314 = vst.msk [vmem:[%s170] sm:$0xff] %vm313, %v281
      %315 = vst.msk [vmem:[%s170 + $0x8] sm:$0xff] %vm313, %v282
      %316 = vst.msk [vmem:[%s170 + $0x10] sm:$0xff] %vm313, %v283
      %317 = vst.msk [vmem:[%s170 + $0x18] sm:$0xff] %vm313, %v284
      %318 = vst.msk [vmem:[%s170 + $0x20] sm:$0xff] %vm313, %v285
      %319 = vst.msk [vmem:[%s170 + $0x28] sm:$0xff] %vm313, %v286
      %320 = vst.msk [vmem:[%s170 + $0x30] sm:$0xff] %vm313, %v287
      %321 = vst.msk [vmem:[%s170 + $0x38] sm:$0xff] %vm313, %v288
      %322 = vst.msk [vmem:[%s170 + $0x40] sm:$0xff] %vm313, %v289
      %323 = vst.msk [vmem:[%s170 + $0x48] sm:$0xff] %vm313, %v290
      %324 = vst.msk [vmem:[%s170 + $0x50] sm:$0xff] %vm313, %v291
      %325 = vst.msk [vmem:[%s170 + $0x58] sm:$0xff] %vm313, %v292
      %326 = vst.msk [vmem:[%s170 + $0x60] sm:$0xff] %vm313, %v293
      %327 = vst.msk [vmem:[%s170 + $0x68] sm:$0xff] %vm313, %v294
      %328 = vst.msk [vmem:[%s170 + $0x70] sm:$0xff] %vm313, %v295
      %329 = vst.msk [vmem:[%s170 + $0x78] sm:$0xff] %vm313, %v296
      %330 = vst.msk [vmem:[%s170 + $0x80] sm:$0xff] %vm313, %v297
      %331 = vst.msk [vmem:[%s170 + $0x88] sm:$0xff] %vm313, %v298
      %332 = vst.msk [vmem:[%s170 + $0x90] sm:$0xff] %vm313, %v299
      %333 = vst.msk [vmem:[%s170 + $0x98] sm:$0xff] %vm313, %v300
      %334 = vst.msk [vmem:[%s170 + $0xa0] sm:$0xff] %vm313, %v301
      %335 = vst.msk [vmem:[%s170 + $0xa8] sm:$0xff] %vm313, %v302
      %336 = vst.msk [vmem:[%s170 + $0xb0] sm:$0xff] %vm313, %v303
      %337 = vst.msk [vmem:[%s170 + $0xb8] sm:$0xff] %vm313, %v304
      %338 = vst.msk [vmem:[%s170 + $0xc0] sm:$0xff] %vm313, %v305
      %339 = vst.msk [vmem:[%s170 + $0xc8] sm:$0xff] %vm313, %v306
      %340 = vst.msk [vmem:[%s170 + $0xd0] sm:$0xff] %vm313, %v307
      %341 = vst.msk [vmem:[%s170 + $0xd8] sm:$0xff] %vm313, %v308
      %342 = vst.msk [vmem:[%s170 + $0xe0] sm:$0xff] %vm313, %v309
      %343 = vst.msk [vmem:[%s170 + $0xe8] sm:$0xff] %vm313, %v310
      %344 = vst.msk [vmem:[%s170 + $0xf0] sm:$0xff] %vm313, %v311
      %345 = vst.msk [vmem:[%s170 + $0xf8] sm:$0xff] %vm313, %v312
      %p346 = scmp.lt.s32.totalorder %s14, 1
      %s347 = scalar_select %p346, %s14, 1
      %s348 = smul.addr %s347, 32
      %s349 = smul.addr %s348, 8
      %s350 = scalar_lea.vmem %s3, %s349
      // Predicated region
      $region33: #{conv2d_block.3} parent=31 // pred_check
        %p351 = pneg %p100
      $region34: #{conv2d_block.3} parent=31 // pred_check_branch
        %353 = sbr.rel (%p351) target = $region36
      $region35: #{conv2d_block.3} parent=31 // pred_region
        _
      $region36: #{conv2d_block.3} parent=31 // pred_fallthru
        _
    $region32: #{conv2d_block.3} parent=5 // pred_fallthru
      _
    %p354 = scmp.le.s32.totalorder 2, %s9
    // Predicated region
    $region37: #{conv2d_block.3} parent=5 // pred_check
      %p355 = pneg %p354
    $region38: #{conv2d_block.3} parent=5 // pred_check_branch
      %357 = sbr.rel (%p355) target = $region40
    $region39: #{conv2d_block.3} parent=5 // pred_region
      %s358 = ssub.s32 %s9, 2
      // Predicated region
      $region41: #{conv2d_block.3} parent=39 // pred_check
        %p359 = pneg %p106
      $region42: #{conv2d_block.3} parent=39 // pred_check_branch
        %361 = sbr.rel (%p359) target = $region44
      $region43: #{conv2d_block.3} parent=39 // pred_region
        %p362 = scmp.lt.s32.totalorder %s15, 1
        %s363 = scalar_select %p362, %s15, 1
        %s364 = smul.addr %s363, 32
        %s365 = smul.addr %s364, 8
        %s366 = scalar_lea.vmem %s3, %s365
      $region44: #{conv2d_block.3} parent=39 // pred_fallthru
        _
    $region40: #{conv2d_block.3} parent=5 // pred_fallthru
      _
  $region6: #{conv2d_block.3} parent=0 // loop_footer
    %s13 = sadd.s32 1, %s9
  $region7: #{conv2d_block.3} parent=0 // loop_footer_branch
    %8 = sbr.rel target = $region3
  $region8: #{conv2d_block.3} parent=0 // loop_exit
    _

// kernel: conv2d_block.2
$region0: #{conv2d_block.2}
  #allocation0 [shape = 'u32[]', space=smem, size = 0x4, offset = 0x4, fixed_abs, tag = 'smem constant byte address 0x4 - core index']
  #allocation1 [shape = 'u32[144,128]{1,0:T(1,128)}', space=vmem, size = 0x12000, scoped, tag = 'internal scratch']
  %s0 = inlined_call_operand.vmem [shape: bf16[2,18,18,4], index: 0, kind: input, shape index: {}]
  %s1 = inlined_call_operand.vmem [shape: bf16[36,8], index: 1, kind: input, shape index: {}]
  %s2 = inlined_call_operand.vmem [shape: f32[1,8], index: 2, kind: input, shape index: {}]
  %s3 = inlined_call_operand.vmem [shape: f32[2,16,16,8], index: 3, kind: output, shape index: {0}]
  %s4 = inlined_call_operand.vmem [shape: f32[2,1,8], index: 4, kind: output, shape index: {1}]
  %s5 = inlined_call_operand.vmem [shape: f32[2,1,8], index: 5, kind: output, shape index: {2}]
  %6 = xla_tuple %s3, %s4, %s5
  %s7 = sld [smem:[#allocation0]]
  $region61: #{conv2d_block.2} parent=0
    _
  %s9 = ssub.s32 1, %s7
  %s10 = scalar_select 0, %s9, %s7
  loop: start=0, step=1, limit=4
  $region2: #{conv2d_block.2} parent=0 // loop_pre_header
    _
  $region3: #{conv2d_block.2} parent=0 // loop_header
    %s12 = sphi 0, %s16
    %p13 = scmp.ge.s32.totalorder %s12, 4
    %s22 = sphi 0, %s24
    %s25 = sphi 0, %s22
    %s26 = sphi 0, %s25
    %s42 = sphi 0, %s26
    %s46 = sphi 0, %s46
    %s48 = sphi 0, %s46
    %s49 = sphi 0, %s48
    %s63 = sphi 0, %s49
    %s67 = sphi 0, %s67
    %s69 = sphi 0, %s67
    %s70 = sphi 0, %s69
    %s84 = sphi 0, %s70
    %s90 = sphi 0, %s92
    %s93 = sphi 0, %s90
    %s94 = sphi 0, %s93
    %s110 = sphi 0, %s94
    %s116 = sphi 0, %s118
    %s119 = sphi 0, %s116
    %s120 = sphi 0, %s119
    %s136 = sphi 0, %s120
    %s142 = sphi 0, %s144
    %s145 = sphi 0, %s142
    %s146 = sphi 0, %s145
    %s162 = sphi 0, %s146
  $region4: #{conv2d_block.2} parent=0 // loop_header_branch
    %15 = sbr.rel (%p13) target = $region8
  $region5: #{conv2d_block.2} parent=0 // loop_body
    %s17 = ssub.s32 %s12, 1
    %s18 = ssub.s32 %s12, 2
    %s19 = sadd.s32 %s12, 1
    %s20 = ssub.s32 %s12, %s19
    %p21 = scmp.eq.s32.totalorder %s20, 0
    %s23 = sadd.s32 %s22, 1
    %s24 = scalar_select %p21, %s22, %s23
    %p27 = pneg %p21
    %p28 = scmp.eq.s32.totalorder %s12, 1
    %p29 = por %p27, %p28
    %p30 = scmp.ne.s32.totalorder %s22, %s25
    %p31 = scmp.eq.s32.totalorder %s12, 0
    %p32 = por %p30, %p31
    %p33 = scmp.ne.s32.totalorder %s22, %s25
    %p34 = scmp.eq.s32.totalorder %s17, 1
    %p35 = por %p33, %p34
    %p36 = scmp.ne.s32.totalorder %s25, %s26
    %p37 = scmp.eq.s32.totalorder %s17, 0
    %p38 = por %p36, %p37
    %p39 = scmp.ne.s32.totalorder %s25, %s26
    %p40 = scmp.eq.s32.totalorder %s18, 1
    %p41 = por %p39, %p40
    %p43 = scmp.ne.s32.totalorder %s26, %s42
    %p44 = scmp.eq.s32.totalorder %s18, 0
    %p45 = por %p43, %p44
    %s47 = sadd.s32 %s46, 1
    %p50 = scmp.eq.s32.totalorder %s12, 1
    %p51 = scmp.ne.s32.totalorder %s46, %s48
    %p52 = scmp.eq.s32.totalorder %s12, 0
    %p53 = por %p51, %p52
    %p54 = scmp.ne.s32.totalorder %s46, %s48
    %p55 = scmp.eq.s32.totalorder %s17, 1
    %p56 = por %p54, %p55
    %p57 = scmp.ne.s32.totalorder %s48, %s49
    %p58 = scmp.eq.s32.totalorder %s17, 0
    %p59 = por %p57, %p58
    %p60 = scmp.ne.s32.totalorder %s48, %s49
    %p61 = scmp.eq.s32.totalorder %s18, 1
    %p62 = por %p60, %p61
    %p64 = scmp.ne.s32.totalorder %s49, %s63
    %p65 = scmp.eq.s32.totalorder %s18, 0
    %p66 = por %p64, %p65
    %s68 = sadd.s32 %s67, 1
    %p71 = scmp.eq.s32.totalorder %s12, 1
    %p72 = scmp.ne.s32.totalorder %s67, %s69
    %p73 = scmp.eq.s32.totalorder %s12, 0
    %p74 = por %p72, %p73
    %p75 = scmp.ne.s32.totalorder %s67, %s69
    %p76 = scmp.eq.s32.totalorder %s17, 1
    %p77 = por %p75, %p76
    %p78 = scmp.ne.s32.totalorder %s69, %s70
    %p79 = scmp.eq.s32.totalorder %s17, 0
    %p80 = por %p78, %p79
    %p81 = scmp.ne.s32.totalorder %s69, %s70
    %p82 = scmp.eq.s32.totalorder %s18, 1
    %p83 = por %p81, %p82
    %p85 = scmp.ne.s32.totalorder %s70, %s84
    %p86 = scmp.eq.s32.totalorder %s18, 0
    %p87 = por %p85, %p86
    %s88 = ssub.s32 %s12, %s19
    %p89 = scmp.eq.s32.totalorder %s88, 0
    %s91 = sadd.s32 %s90, 1
    %s92 = scalar_select %p89, %s90, %s91
    %p95 = pneg %p89
    %p96 = scmp.eq.s32.totalorder %s12, 1
    %p97 = por %p95, %p96
    %p98 = scmp.ne.s32.totalorder %s90, %s93
    %p99 = scmp.eq.s32.totalorder %s12, 0
    %p100 = por %p98, %p99
    %p101 = scmp.ne.s32.totalorder %s90, %s93
    %p102 = scmp.eq.s32.totalorder %s17, 1
    %p103 = por %p101, %p102
    %p104 = scmp.ne.s32.totalorder %s93, %s94
    %p105 = scmp.eq.s32.totalorder %s17, 0
    %p106 = por %p104, %p105
    %p107 = scmp.ne.s32.totalorder %s93, %s94
    %p108 = scmp.eq.s32.totalorder %s18, 1
    %p109 = por %p107, %p108
    %p111 = scmp.ne.s32.totalorder %s94, %s110
    %p112 = scmp.eq.s32.totalorder %s18, 0
    %p113 = por %p111, %p112
    %s114 = ssub.s32 %s12, %s19
    %p115 = scmp.eq.s32.totalorder %s114, 0
    %s117 = sadd.s32 %s116, 1
    %s118 = scalar_select %p115, %s116, %s117
    %p121 = pneg %p115
    %p122 = scmp.eq.s32.totalorder %s12, 1
    %p123 = por %p121, %p122
    %p124 = scmp.ne.s32.totalorder %s116, %s119
    %p125 = scmp.eq.s32.totalorder %s12, 0
    %p126 = por %p124, %p125
    %p127 = scmp.ne.s32.totalorder %s116, %s119
    %p128 = scmp.eq.s32.totalorder %s17, 1
    %p129 = por %p127, %p128
    %p130 = scmp.ne.s32.totalorder %s119, %s120
    %p131 = scmp.eq.s32.totalorder %s17, 0
    %p132 = por %p130, %p131
    %p133 = scmp.ne.s32.totalorder %s119, %s120
    %p134 = scmp.eq.s32.totalorder %s18, 1
    %p135 = por %p133, %p134
    %p137 = scmp.ne.s32.totalorder %s120, %s136
    %p138 = scmp.eq.s32.totalorder %s18, 0
    %p139 = por %p137, %p138
    %s140 = ssub.s32 %s12, %s19
    %p141 = scmp.eq.s32.totalorder %s140, 0
    %s143 = sadd.s32 %s142, 1
    %s144 = scalar_select %p141, %s142, %s143
    %p147 = pneg %p141
    %p148 = scmp.eq.s32.totalorder %s12, 1
    %p149 = por %p147, %p148
    %p150 = scmp.ne.s32.totalorder %s142, %s145
    %p151 = scmp.eq.s32.totalorder %s12, 0
    %p152 = por %p150, %p151
    %p153 = scmp.ne.s32.totalorder %s142, %s145
    %p154 = scmp.eq.s32.totalorder %s17, 1
    %p155 = por %p153, %p154
    %p156 = scmp.ne.s32.totalorder %s145, %s146
    %p157 = scmp.eq.s32.totalorder %s17, 0
    %p158 = por %p156, %p157
    %p159 = scmp.ne.s32.totalorder %s145, %s146
    %p160 = scmp.eq.s32.totalorder %s18, 1
    %p161 = por %p159, %p160
    %p163 = scmp.ne.s32.totalorder %s146, %s162
    %p164 = scmp.eq.s32.totalorder %s18, 0
    %p165 = por %p163, %p164
    %p166 = scmp.le.s32.totalorder 1, %s12
    %p167 = scmp.lt.s32.totalorder %s12, 3
    %p168 = pnand %p166, %p167
    %p169 = pneg %p168
    // Predicated region
    $region9: #{conv2d_block.2} parent=5 // pred_check
      _
    $region10: #{conv2d_block.2} parent=5 // pred_check_branch
      %171 = sbr.rel (%p168) target = $region12
    $region11: #{conv2d_block.2} parent=5 // pred_region
      %s172 = ssub.s32 %s12, 1
      // Predicated region
      $region13: #{conv2d_block.2} parent=11 // pred_check
        %p173 = pneg %p59
      $region14: #{conv2d_block.2} parent=11 // pred_check_branch
        %175 = sbr.rel (%p173) target = $region16
      $region15: #{conv2d_block.2} parent=11 // pred_region
        _
      $region16: #{conv2d_block.2} parent=11 // pred_fallthru
        _
      // Predicated region
      $region17: #{conv2d_block.2} parent=11 // pred_check
        %p176 = pneg %p80
      $region18: #{conv2d_block.2} parent=11 // pred_check_branch
        %178 = sbr.rel (%p176) target = $region20
      $region19: #{conv2d_block.2} parent=11 // pred_region
        _
      $region20: #{conv2d_block.2} parent=11 // pred_fallthru
        _
    $region12: #{conv2d_block.2} parent=5 // pred_fallthru
      _
    %p179 = scmp.lt.s32.totalorder %s12, 2
    // Predicated region
    $region21: #{conv2d_block.2} parent=5 // pred_check
      %p180 = pneg %p179
    $region22: #{conv2d_block.2} parent=5 // pred_check_branch
      %182 = sbr.rel (%p180) target = $region24
    $region23: #{conv2d_block.2} parent=5 // pred_region
      // Predicated region
      $region25: #{conv2d_block.2} parent=23 // pred_check
        %p183 = pneg %p32
      $region26: #{conv2d_block.2} parent=23 // pred_check_branch
        %185 = sbr.rel (%p183) target = $region28
      $region27: #{conv2d_block.2} parent=23 // pred_region
        %p186 = scmp.lt.s32.totalorder %s12, 1
        %s187 = scalar_select %p186, %s12, 1
        %s188 = smul.addr %s187, 54
        %s189 = smul.addr %s188, 4
        %s190 = scalar_lea.vmem %s0, %s189
      $region28: #{conv2d_block.2} parent=23 // pred_fallthru
        _
    $region24: #{conv2d_block.2} parent=5 // pred_fallthru
      _
    %p191 = scmp.le.s32.totalorder 1, %s12
    %p192 = scmp.lt.s32.totalorder %s12, 3
    %p193 = pnand %p191, %p192
    %p194 = pneg %p193
    // Predicated region
    $region29: #{conv2d_block.2} parent=5 // pred_check
      _
    $region30: #{conv2d_block.2} parent=5 // pred_check_branch
      %196 = sbr.rel (%p193) target = $region32
    $region31: #{conv2d_block.2} parent=5 // pred_region
      %s197 = ssub.s32 %s12, 1
      %p198 = scmp.lt.s32.totalorder %s17, 1
      %s199 = scalar_select %p198, %s17, 1
      %s200 = smul.addr %s199, 54
      %s201 = smul.addr %s200, 4
      %s202 = scalar_lea.vmem %s0, %s201
      %p203 = pneg %p38
      %p204 = pneg %p35
      %p205 = pneg %p59
      %p206 = pneg %p56
      %p207 = pneg %p80
      %p208 = pneg %p77
      %p209 = pneg %p106
      %p210 = pneg %p103
      %p211 = scmp.lt.s32.totalorder %s17, 1
      %s212 = scalar_select %p211, %s17, 1
      %s213 = smul.addr %s212, 32
      %s214 = smul.addr %s213, 8
      %s215 = scalar_lea.vmem %s3, %s214
      %p216 = pneg %p132
      %p217 = pneg %p129
      %p218 = scmp.lt.s32.totalorder %s17, 1
      %s219 = scalar_select %p218, %s17, 1
      %s220 = scalar_lea.vmem %s4, %s219
      %p221 = pneg %p158
      %p222 = pneg %p155
      %p223 = scmp.lt.s32.totalorder %s17, 1
      %s224 = scalar_select %p223, %s17, 1
      %s225 = scalar_lea.vmem %s5, %s224
      %p226 = scmp.lt.s32.totalorder %s17, 1
      %s227 = scalar_select %p226, %s17, 1
      %s228 = smul.addr %s227, 54
      %s229 = smul.addr %s228, 4
      %s230 = scalar_lea.vmem %s0, %s229
      %p231 = scmp.lt.s32.totalorder %s17, 1
      %s232 = scalar_select %p231, %s17, 1
      %s233 = smul.addr %s232, 32
      %s234 = smul.addr %s233, 8
      %s235 = scalar_lea.vmem %s3, %s234
      %p236 = scmp.lt.s32.totalorder %s17, 1
      %s237 = scalar_select %p236, %s17, 1
      %s238 = scalar_lea.vmem %s4, %s237
      %p239 = scmp.lt.s32.totalorder %s17, 1
      %s240 = scalar_select %p239, %s17, 1
      %s241 = scalar_lea.vmem %s5, %s240
      %v243 = vld [vmem:[%s230] sm:$0xf]
      %v244 = vld [vmem:[%s230 + $0x4] sm:$0xf]
      %v245 = vld [vmem:[%s230 + $0x8] sm:$0x1]
      %v246 = vld [vmem:[%s230 + $0xc] sm:$0xf]
      %v247 = vld [vmem:[%s230 + $0x10] sm:$0xf]
      %v248 = vld [vmem:[%s230 + $0x14] sm:$0x1]
      %v249 = vld [vmem:[%s230 + $0x18] sm:$0xf]
      %v250 = vld [vmem:[%s230 + $0x1c] sm:$0xf]
      %v251 = vld [vmem:[%s230 + $0x20] sm:$0x1]
      %v252 = vld [vmem:[%s230 + $0x24] sm:$0xf]
      %v253 = vld [vmem:[%s230 + $0x28] sm:$0xf]
      %v254 = vld [vmem:[%s230 + $0x2c] sm:$0x1]
      %v255 = vld [vmem:[%s230 + $0x30] sm:$0xf]
      %v256 = vld [vmem:[%s230 + $0x34] sm:$0xf]
      %v257 = vld [vmem:[%s230 + $0x38] sm:$0x1]
      %v258 = vld [vmem:[%s230 + $0x3c] sm:$0xf]
      %v259 = vld [vmem:[%s230 + $0x40] sm:$0xf]
      %v260 = vld [vmem:[%s230 + $0x44] sm:$0x1]
      %v261 = vld [vmem:[%s230 + $0x48] sm:$0xf]
      %v262 = vld [vmem:[%s230 + $0x4c] sm:$0xf]
      %v263 = vld [vmem:[%s230 + $0x50] sm:$0x1]
      %v264 = vld [vmem:[%s230 + $0x54] sm:$0xf]
      %v265 = vld [vmem:[%s230 + $0x58] sm:$0xf]
      %v266 = vld [vmem:[%s230 + $0x5c] sm:$0x1]
      %v267 = vld [vmem:[%s230 + $0x60] sm:$0xf]
      %v268 = vld [vmem:[%s230 + $0x64] sm:$0xf]
      %v269 = vld [vmem:[%s230 + $0x68] sm:$0x1]
      %v270 = vld [vmem:[%s230 + $0x6c] sm:$0xf]
      %v271 = vld [vmem:[%s230 + $0x70] sm:$0xf]
      %v272 = vld [vmem:[%s230 + $0x74] sm:$0x1]
      %v273 = vld [vmem:[%s230 + $0x78] sm:$0xf]
      %v274 = vld [vmem:[%s230 + $0x7c] sm:$0xf]
      %v275 = vld [vmem:[%s230 + $0x80] sm:$0x1]
      %v276 = vld [vmem:[%s230 + $0x84] sm:$0xf]
      %v277 = vld [vmem:[%s230 + $0x88] sm:$0xf]
      %v278 = vld [vmem:[%s230 + $0x8c] sm:$0x1]
      %v279 = vld [vmem:[%s230 + $0x90] sm:$0xf]
      %v280 = vld [vmem:[%s230 + $0x94] sm:$0xf]
      %v281 = vld [vmem:[%s230 + $0x98] sm:$0x1]
      %v282 = vld [vmem:[%s230 + $0x9c] sm:$0xf]
      %v283 = vld [vmem:[%s230 + $0xa0] sm:$0xf]
      %v284 = vld [vmem:[%s230 + $0xa4] sm:$0x1]
      %v285 = vld [vmem:[%s230 + $0xa8] sm:$0xf]
      %v286 = vld [vmem:[%s230 + $0xac] sm:$0xf]
      %v287 = vld [vmem:[%s230 + $0xb0] sm:$0x1]
      %v288 = vld [vmem:[%s230 + $0xb4] sm:$0xf]
      %v289 = vld [vmem:[%s230 + $0xb8] sm:$0xf]
      %v290 = vld [vmem:[%s230 + $0xbc] sm:$0x1]
      %v291 = vld [vmem:[%s230 + $0xc0] sm:$0xf]
      %v292 = vld [vmem:[%s230 + $0xc4] sm:$0xf]
      %v293 = vld [vmem:[%s230 + $0xc8] sm:$0x1]
      %v294 = vld [vmem:[%s230 + $0xcc] sm:$0xf]
      %v295 = vld [vmem:[%s230 + $0xd0] sm:$0xf]
      %v296 = vld [vmem:[%s230 + $0xd4] sm:$0x1]
      %v297 = vunpack.c.l.bf16 %v243
      %v298 = vunpack.c.l.bf16 %v244
      %v299 = vunpack.c.l.bf16 %v245
      %v300 = vunpack.c.l.bf16 %v246
      %v301 = vunpack.c.l.bf16 %v247
      %v302 = vunpack.c.l.bf16 %v248
      %v303 = vunpack.c.l.bf16 %v249
      %v304 = vunpack.c.l.bf16 %v250
      %v305 = vunpack.c.l.bf16 %v251
      %v306 = vunpack.c.l.bf16 %v252
      %v307 = vunpack.c.l.bf16 %v253
      %v308 = vunpack.c.l.bf16 %v254
      %v309 = vunpack.c.l.bf16 %v255
      %v310 = vunpack.c.l.bf16 %v256
      %v311 = vunpack.c.l.bf16 %v257
      %v312 = vunpack.c.l.bf16 %v258
      %v313 = vunpack.c.l.bf16 %v259
      %v314 = vunpack.c.l.bf16 %v260
      %v315 = vunpack.c.l.bf16 %v261
      %v316 = vunpack.c.l.bf16 %v262
      %v317 = vunpack.c.l.bf16 %v263
      %v318 = vunpack.c.l.bf16 %v264
      %v319 = vunpack.c.l.bf16 %v265
      %v320 = vunpack.c.l.bf16 %v266
      %v321 = vunpack.c.l.bf16 %v267
      %v322 = vunpack.c.l.bf16 %v268
      %v323 = vunpack.c.l.bf16 %v269
      %v324 = vunpack.c.l.bf16 %v270
      %v325 = vunpack.c.l.bf16 %v271
      %v326 = vunpack.c.l.bf16 %v272
      %v327 = vunpack.c.l.bf16 %v273
      %v328 = vunpack.c.l.bf16 %v274
      %v329 = vunpack.c.l.bf16 %v275
      %v330 = vunpack.c.l.bf16 %v276
      %v331 = vunpack.c.l.bf16 %v277
      %v332 = vunpack.c.l.bf16 %v278
      %v333 = vunpack.c.l.bf16 %v279
      %v334 = vunpack.c.l.bf16 %v280
      %v335 = vunpack.c.l.bf16 %v281
      %v336 = vunpack.c.l.bf16 %v282
      %v337 = vunpack.c.l.bf16 %v283
      %v338 = vunpack.c.l.bf16 %v284
      %v339 = vunpack.c.l.bf16 %v285
      %v340 = vunpack.c.l.bf16 %v286
      %v341 = vunpack.c.l.bf16 %v287
      %v342 = vunpack.c.l.bf16 %v288
      %v343 = vunpack.c.l.bf16 %v289
      %v344 = vunpack.c.l.bf16 %v290
      %v345 = vunpack.c.l.bf16 %v291
      %v346 = vunpack.c.l.bf16 %v292
      %v347 = vunpack.c.l.bf16 %v293
      %v348 = vunpack.c.l.bf16 %v294
      %v349 = vunpack.c.l.bf16 %v295
      %v350 = vunpack.c.l.bf16 %v296
      %vm399 = vcmask 1046528
      %v400 = vrot.slane %v297, 1
      %v401 = vrot.slane %v298, 1
      %v402 = vsel %vm399, %v400, %v401
      %v403 = vrot.slane %v299, 1
      %v404 = vsel %vm399, %v401, %v403
      %v405 = vrot.slane %v300, 1
      %v406 = vrot.slane %v301, 1
      %v407 = vsel %vm399, %v405, %v406
      %v408 = vrot.slane %v302, 1
      %v409 = vsel %vm399, %v406, %v408
      %v410 = vrot.slane %v303, 1
      %v411 = vrot.slane %v304, 1
      %v412 = vsel %vm399, %v410, %v411
      %v413 = vrot.slane %v305, 1
      %v414 = vsel %vm399, %v411, %v413
      %v415 = vrot.slane %v306, 1
      %v416 = vrot.slane %v307, 1
      %v417 = vsel %vm399, %v415, %v416
      %v418 = vrot.slane %v308, 1
      %v419 = vsel %vm399, %v416, %v418
      %v420 = vrot.slane %v309, 1
      %v421 = vrot.slane %v310, 1
      %v422 = vsel %vm399, %v420, %v421
      %v423 = vrot.slane %v311, 1
      %v424 = vsel %vm399, %v421, %v423
      %v425 = vrot.slane %v312, 1
      %v426 = vrot.slane %v313, 1
      %v427 = vsel %vm399, %v425, %v426
      %v428 = vrot.slane %v314, 1
      %v429 = vsel %vm399, %v426, %v428
      %v430 = vrot.slane %v315, 1
      %v431 = vrot.slane %v316, 1
      %v432 = vsel %vm399, %v430, %v431
      %v433 = vrot.slane %v317, 1
      %v434 = vsel %vm399, %v431, %v433
      %v435 = vrot.slane %v318, 1
      %v436 = vrot.slane %v319, 1
      %v437 = vsel %vm399, %v435, %v436
      %v438 = vrot.slane %v320, 1
      %v439 = vsel %vm399, %v436, %v438
      %v440 = vrot.slane %v321, 1
      %v441 = vrot.slane %v322, 1
      %v442 = vsel %vm399, %v440, %v441
      %v443 = vrot.slane %v323, 1
      %v444 = vsel %vm399, %v441, %v443
      %v445 = vrot.slane %v324, 1
      %v446 = vrot.slane %v325, 1
      %v447 = vsel %vm399, %v445, %v446
      %v448 = vrot.slane %v326, 1
      %v449 = vsel %vm399, %v446, %v448
      %v450 = vrot.slane %v327, 1
      %v451 = vrot.slane %v328, 1
      %v452 = vsel %vm399, %v450, %v451
      %v453 = vrot.slane %v329, 1
      %v454 = vsel %vm399, %v451, %v453
      %v455 = vrot.slane %v330, 1
      %v456 = vrot.slane %v331, 1
      %v457 = vsel %vm399, %v455, %v456
      %v458 = vrot.slane %v332, 1
      %v459 = vsel %vm399, %v456, %v458
      %v460 = vrot.slane %v333, 1
      %v461 = vrot.slane %v334, 1
      %v462 = vsel %vm399, %v460, %v461
      %v463 = vrot.slane %v335, 1
      %v464 = vsel %vm399, %v461, %v463
      %v465 = vrot.slane %v336, 1
      %v466 = vrot.slane %v337, 1
      %v467 = vsel %vm399, %v465, %v466
      %v468 = vrot.slane %v338, 1
      %v469 = vsel %vm399, %v466, %v468
      %v470 = vrot.slane %v339, 1
      %v471 = vrot.slane %v340, 1
      %v472 = vsel %vm399, %v470, %v471
      %v473 = vrot.slane %v341, 1
      %v474 = vsel %vm399, %v471, %v473
      %v475 = vrot.slane %v342, 1
      %v476 = vrot.slane %v343, 1
      %v477 = vsel %vm399, %v475, %v476
      %v478 = vrot.slane %v344, 1
      %v479 = vsel %vm399, %v476, %v478
      %vm480 = vcmask 1045504
      %v481 = vrot.slane %v297, 2
      %v482 = vrot.slane %v298, 2
      %v483 = vsel %vm480, %v481, %v482
      %v484 = vrot.slane %v299, 2
      %v485 = vsel %vm480, %v482, %v484
      %v486 = vrot.slane %v300, 2
      %v487 = vrot.slane %v301, 2
      %v488 = vsel %vm480, %v486, %v487
      %v489 = vrot.slane %v302, 2
      %v490 = vsel %vm480, %v487, %v489
      %v491 = vrot.slane %v303, 2
      %v492 = vrot.slane %v304, 2
      %v493 = vsel %vm480, %v491, %v492
      %v494 = vrot.slane %v305, 2
      %v495 = vsel %vm480, %v492, %v494
      %v496 = vrot.slane %v306, 2
      %v497 = vrot.slane %v307, 2
      %v498 = vsel %vm480, %v496, %v497
      %v499 = vrot.slane %v308, 2
      %v500 = vsel %vm480, %v497, %v499
      %v501 = vrot.slane %v309, 2
      %v502 = vrot.slane %v310, 2
      %v503 = vsel %vm480, %v501, %v502
      %v504 = vrot.slane %v311, 2
      %v505 = vsel %vm480, %v502, %v504
      %v506 = vrot.slane %v312, 2
      %v507 = vrot.slane %v313, 2
      %v508 = vsel %vm480, %v506, %v507
      %v509 = vrot.slane %v314, 2
      %v510 = vsel %vm480, %v507, %v509
      %v511 = vrot.slane %v315, 2
      %v512 = vrot.slane %v316, 2
      %v513 = vsel %vm480, %v511, %v512
      %v514 = vrot.slane %v317, 2
      %v515 = vsel %vm480, %v512, %v514
      %v516 = vrot.slane %v318, 2
      %v517 = vrot.slane %v319, 2
      %v518 = vsel %vm480, %v516, %v517
      %v519 = vrot.slane %v320, 2
      %v520 = vsel %vm480, %v517, %v519
      %v521 = vrot.slane %v321, 2
      %v522 = vrot.slane %v322, 2
      %v523 = vsel %vm480, %v521, %v522
      %v524 = vrot.slane %v323, 2
      %v525 = vsel %vm480, %v522, %v524
      %v526 = vrot.slane %v324, 2
      %v527 = vrot.slane %v325, 2
      %v528 = vsel %vm480, %v526, %v527
      %v529 = vrot.slane %v326, 2
      %v530 = vsel %vm480, %v527, %v529
      %v531 = vrot.slane %v327, 2
      %v532 = vrot.slane %v328, 2
      %v533 = vsel %vm480, %v531, %v532
      %v534 = vrot.slane %v329, 2
      %v535 = vsel %vm480, %v532, %v534
      %v536 = vrot.slane %v330, 2
      %v537 = vrot.slane %v331, 2
      %v538 = vsel %vm480, %v536, %v537
      %v539 = vrot.slane %v332, 2
      %v540 = vsel %vm480, %v537, %v539
      %v541 = vrot.slane %v333, 2
      %v542 = vrot.slane %v334, 2
      %v543 = vsel %vm480, %v541, %v542
      %v544 = vrot.slane %v335, 2
      %v545 = vsel %vm480, %v542, %v544
      %v546 = vrot.slane %v336, 2
      %v547 = vrot.slane %v337, 2
      %v548 = vsel %vm480, %v546, %v547
      %v549 = vrot.slane %v338, 2
      %v550 = vsel %vm480, %v547, %v549
      %v551 = vrot.slane %v339, 2
      %v552 = vrot.slane %v340, 2
      %v553 = vsel %vm480, %v551, %v552
      %v554 = vrot.slane %v341, 2
      %v555 = vsel %vm480, %v552, %v554
      %v556 = vrot.slane %v342, 2
      %v557 = vrot.slane %v343, 2
      %v558 = vsel %vm480, %v556, %v557
      %v559 = vrot.slane %v344, 2
      %v560 = vsel %vm480, %v557, %v559
      %v564 = vrot.slane %v345, 1
      %v565 = vrot.slane %v346, 1
      %v566 = vsel %vm399, %v564, %v565
      %v567 = vrot.slane %v347, 1
      %v568 = vsel %vm399, %v565, %v567
      %v569 = vrot.slane %v345, 2
      %v570 = vrot.slane %v346, 2
      %v571 = vsel %vm480, %v569, %v570
      %v572 = vrot.slane %v347, 2
      %v573 = vsel %vm480, %v570, %v572
      %v577 = vrot.slane %v348, 1
      %v578 = vrot.slane %v349, 1
      %v579 = vsel %vm399, %v577, %v578
      %v580 = vrot.slane %v350, 1
      %v581 = vsel %vm399, %v578, %v580
      %v582 = vrot.slane %v348, 2
      %v583 = vrot.slane %v349, 2
      %v584 = vsel %vm480, %v582, %v583
      %v585 = vrot.slane %v350, 2
      %v586 = vsel %vm480, %v583, %v585
      %587 = vrot.lane.b32.xlu0 %v402, 4
      %v588 = vpop.permute.xlu0 %587
      %589 = vrot.lane.b32.xlu0 %v404, 4
      %v590 = vpop.permute.xlu0 %589
      %591 = vrot.lane.b32.xlu0 %v407, 4
      %v592 = vpop.permute.xlu0 %591
      %593 = vrot.lane.b32.xlu0 %v409, 4
      %v594 = vpop.permute.xlu0 %593
      %595 = vrot.lane.b32.xlu0 %v412, 4
      %v596 = vpop.permute.xlu0 %595
      %597 = vrot.lane.b32.xlu0 %v414, 4
      %v598 = vpop.permute.xlu0 %597
      %599 = vrot.lane.b32.xlu0 %v417, 4
      %v600 = vpop.permute.xlu0 %599
      %601 = vrot.lane.b32.xlu0 %v419, 4
      %v602 = vpop.permute.xlu0 %601
      %603 = vrot.lane.b32.xlu0 %v422, 4
      %v604 = vpop.permute.xlu0 %603
      %605 = vrot.lane.b32.xlu0 %v424, 4
      %v606 = vpop.permute.xlu0 %605
      %607 = vrot.lane.b32.xlu0 %v427, 4
      %v608 = vpop.permute.xlu0 %607
      %609 = vrot.lane.b32.xlu0 %v429, 4
      %v610 = vpop.permute.xlu0 %609
      %611 = vrot.lane.b32.xlu0 %v432, 4
      %v612 = vpop.permute.xlu0 %611
      %613 = vrot.lane.b32.xlu0 %v434, 4
      %v614 = vpop.permute.xlu0 %613
      %615 = vrot.lane.b32.xlu0 %v437, 4
      %v616 = vpop.permute.xlu0 %615
      %617 = vrot.lane.b32.xlu0 %v439, 4
      %v618 = vpop.permute.xlu0 %617
      %619 = vrot.lane.b32.xlu0 %v442, 4
      %v620 = vpop.permute.xlu0 %619
      %621 = vrot.lane.b32.xlu0 %v444, 4
      %v622 = vpop.permute.xlu0 %621
      %623 = vrot.lane.b32.xlu0 %v447, 4
      %v624 = vpop.permute.xlu0 %623
      %625 = vrot.lane.b32.xlu0 %v449, 4
      %v626 = vpop.permute.xlu0 %625
      %627 = vrot.lane.b32.xlu0 %v452, 4
      %v628 = vpop.permute.xlu0 %627
      %629 = vrot.lane.b32.xlu0 %v454, 4
      %v630 = vpop.permute.xlu0 %629
      %631 = vrot.lane.b32.xlu0 %v457, 4
      %v632 = vpop.permute.xlu0 %631
      %633 = vrot.lane.b32.xlu0 %v459, 4
      %v634 = vpop.permute.xlu0 %633
      %635 = vrot.lane.b32.xlu0 %v462, 4
      %v636 = vpop.permute.xlu0 %635
      %637 = vrot.lane.b32.xlu0 %v464, 4
      %v638 = vpop.permute.xlu0 %637
      %639 = vrot.lane.b32.xlu0 %v467, 4
      %v640 = vpop.permute.xlu0 %639
      %641 = vrot.lane.b32.xlu0 %v469, 4
      %v642 = vpop.permute.xlu0 %641
      %643 = vrot.lane.b32.xlu0 %v472, 4
      %v644 = vpop.permute.xlu0 %643
      %645 = vrot.lane.b32.xlu0 %v474, 4
      %v646 = vpop.permute.xlu0 %645
      %647 = vrot.lane.b32.xlu0 %v477, 4
      %v648 = vpop.permute.xlu0 %647
      %649 = vrot.lane.b32.xlu0 %v479, 4
      %v650 = vpop.permute.xlu0 %649
      %683 = vrot.lane.b32.xlu0 %v483, 8
      %v684 = vpop.permute.xlu0 %683
      %685 = vrot.lane.b32.xlu0 %v485, 8
      %v686 = vpop.permute.xlu0 %685
      %687 = vrot.lane.b32.xlu0 %v488, 8
      %v688 = vpop.permute.xlu0 %687
      %689 = vrot.lane.b32.xlu0 %v490, 8
      %v690 = vpop.permute.xlu0 %689
      %691 = vrot.lane.b32.xlu0 %v493, 8
      %v692 = vpop.permute.xlu0 %691
      %693 = vrot.lane.b32.xlu0 %v495, 8
      %v694 = vpop.permute.xlu0 %693
      %695 = vrot.lane.b32.xlu0 %v498, 8
      %v696 = vpop.permute.xlu0 %695
      %697 = vrot.lane.b32.xlu0 %v500, 8
      %v698 = vpop.permute.xlu0 %697
      %699 = vrot.lane.b32.xlu0 %v503, 8
      %v700 = vpop.permute.xlu0 %699
      %701 = vrot.lane.b32.xlu0 %v505, 8
      %v702 = vpop.permute.xlu0 %701
      %703 = vrot.lane.b32.xlu0 %v508, 8
      %v704 = vpop.permute.xlu0 %703
      %705 = vrot.lane.b32.xlu0 %v510, 8
      %v706 = vpop.permute.xlu0 %705
      %707 = vrot.lane.b32.xlu0 %v513, 8
      %v708 = vpop.permute.xlu0 %707
      %709 = vrot.lane.b32.xlu0 %v515, 8
      %v710 = vpop.permute.xlu0 %709
      %711 = vrot.lane.b32.xlu0 %v518, 8
      %v712 = vpop.permute.xlu0 %711
      %713 = vrot.lane.b32.xlu0 %v520, 8
      %v714 = vpop.permute.xlu0 %713
      %715 = vrot.lane.b32.xlu0 %v523, 8
      %v716 = vpop.permute.xlu0 %715
      %717 = vrot.lane.b32.xlu0 %v525, 8
      %v718 = vpop.permute.xlu0 %717
      %719 = vrot.lane.b32.xlu0 %v528, 8
      %v720 = vpop.permute.xlu0 %719
      %721 = vrot.lane.b32.xlu0 %v530, 8
      %v722 = vpop.permute.xlu0 %721
      %723 = vrot.lane.b32.xlu0 %v533, 8
      %v724 = vpop.permute.xlu0 %723
      %725 = vrot.lane.b32.xlu0 %v535, 8
      %v726 = vpop.permute.xlu0 %725
      %727 = vrot.lane.b32.xlu0 %v538, 8
      %v728 = vpop.permute.xlu0 %727
      %729 = vrot.lane.b32.xlu0 %v540, 8
      %v730 = vpop.permute.xlu0 %729
      %731 = vrot.lane.b32.xlu0 %v543, 8
      %v732 = vpop.permute.xlu0 %731
      %733 = vrot.lane.b32.xlu0 %v545, 8
      %v734 = vpop.permute.xlu0 %733
      %735 = vrot.lane.b32.xlu0 %v548, 8
      %v736 = vpop.permute.xlu0 %735
      %737 = vrot.lane.b32.xlu0 %v550, 8
      %v738 = vpop.permute.xlu0 %737
      %739 = vrot.lane.b32.xlu0 %v553, 8
      %v740 = vpop.permute.xlu0 %739
      %741 = vrot.lane.b32.xlu0 %v555, 8
      %v742 = vpop.permute.xlu0 %741
      %743 = vrot.lane.b32.xlu0 %v558, 8
      %v744 = vpop.permute.xlu0 %743
      %745 = vrot.lane.b32.xlu0 %v560, 8
      %v746 = vpop.permute.xlu0 %745
      %779 = vrot.lane.b32.xlu0 %v300, 12
      %v780 = vpop.permute.xlu0 %779
      %781 = vrot.lane.b32.xlu0 %v301, 12
      %v782 = vpop.permute.xlu0 %781
      %783 = vrot.lane.b32.xlu0 %v303, 12
      %v784 = vpop.permute.xlu0 %783
      %785 = vrot.lane.b32.xlu0 %v304, 12
      %v786 = vpop.permute.xlu0 %785
      %787 = vrot.lane.b32.xlu0 %v306, 12
      %v788 = vpop.permute.xlu0 %787
      %789 = vrot.lane.b32.xlu0 %v307, 12
      %v790 = vpop.permute.xlu0 %789
      %791 = vrot.lane.b32.xlu0 %v309, 12
      %v792 = vpop.permute.xlu0 %791
      %793 = vrot.lane.b32.xlu0 %v310, 12
      %v794 = vpop.permute.xlu0 %793
      %795 = vrot.lane.b32.xlu0 %v312, 12
      %v796 = vpop.permute.xlu0 %795
      %797 = vrot.lane.b32.xlu0 %v313, 12
      %v798 = vpop.permute.xlu0 %797
      %799 = vrot.lane.b32.xlu0 %v315, 12
      %v800 = vpop.permute.xlu0 %799
      %801 = vrot.lane.b32.xlu0 %v316, 12
      %v802 = vpop.permute.xlu0 %801
      %803 = vrot.lane.b32.xlu0 %v318, 12
      %v804 = vpop.permute.xlu0 %803
      %805 = vrot.lane.b32.xlu0 %v319, 12
      %v806 = vpop.permute.xlu0 %805
      %807 = vrot.lane.b32.xlu0 %v321, 12
      %v808 = vpop.permute.xlu0 %807
      %809 = vrot.lane.b32.xlu0 %v322, 12
      %v810 = vpop.permute.xlu0 %809
      %811 = vrot.lane.b32.xlu0 %v324, 12
      %v812 = vpop.permute.xlu0 %811
      %813 = vrot.lane.b32.xlu0 %v325, 12
      %v814 = vpop.permute.xlu0 %813
      %815 = vrot.lane.b32.xlu0 %v327, 12
      %v816 = vpop.permute.xlu0 %815
      %817 = vrot.lane.b32.xlu0 %v328, 12
      %v818 = vpop.permute.xlu0 %817
      %819 = vrot.lane.b32.xlu0 %v330, 12
      %v820 = vpop.permute.xlu0 %819
      %821 = vrot.lane.b32.xlu0 %v331, 12
      %v822 = vpop.permute.xlu0 %821
      %823 = vrot.lane.b32.xlu0 %v333, 12
      %v824 = vpop.permute.xlu0 %823
      %825 = vrot.lane.b32.xlu0 %v334, 12
      %v826 = vpop.permute.xlu0 %825
      %827 = vrot.lane.b32.xlu0 %v336, 12
      %v828 = vpop.permute.xlu0 %827
      %829 = vrot.lane.b32.xlu0 %v337, 12
      %v830 = vpop.permute.xlu0 %829
      %831 = vrot.lane.b32.xlu0 %v339, 12
      %v832 = vpop.permute.xlu0 %831
      %833 = vrot.lane.b32.xlu0 %v340, 12
      %v834 = vpop.permute.xlu0 %833
      %835 = vrot.lane.b32.xlu0 %v342, 12
      %v836 = vpop.permute.xlu0 %835
      %837 = vrot.lane.b32.xlu0 %v343, 12
      %v838 = vpop.permute.xlu0 %837
      %839 = vrot.lane.b32.xlu0 %v345, 12
      %v840 = vpop.permute.xlu0 %839
      %841 = vrot.lane.b32.xlu0 %v346, 12
      %v842 = vpop.permute.xlu0 %841
      %875 = vrot.lane.b32.xlu0 %v407, 16
      %v876 = vpop.permute.xlu0 %875
      %877 = vrot.lane.b32.xlu0 %v409, 16
      %v878 = vpop.permute.xlu0 %877
      %879 = vrot.lane.b32.xlu0 %v412, 16
      %v880 = vpop.permute.xlu0 %879
      %881 = vrot.lane.b32.xlu0 %v414, 16
      %v882 = vpop.permute.xlu0 %881
      %883 = vrot.lane.b32.xlu0 %v417, 16
      %v884 = vpop.permute.xlu0 %883
      %885 = vrot.lane.b32.xlu0 %v419, 16
      %v886 = vpop.permute.xlu0 %885
      %887 = vrot.lane.b32.xlu0 %v422, 16
      %v888 = vpop.permute.xlu0 %887
      %889 = vrot.lane.b32.xlu0 %v424, 16
      %v890 = vpop.permute.xlu0 %889
      %891 = vrot.lane.b32.xlu0 %v427, 16
      %v892 = vpop.permute.xlu0 %891
      %893 = vrot.lane.b32.xlu0 %v429, 16
      %v894 = vpop.permute.xlu0 %893
      %895 = vrot.lane.b32.xlu0 %v432, 16
      %v896 = vpop.permute.xlu0 %895
      %897 = vrot.lane.b32.xlu0 %v434, 16
      %v898 = vpop.permute.xlu0 %897
      %899 = vrot.lane.b32.xlu0 %v437, 16
      %v900 = vpop.permute.xlu0 %899
      %901 = vrot.lane.b32.xlu0 %v439, 16
      %v902 = vpop.permute.xlu0 %901
      %903 = vrot.lane.b32.xlu0 %v442, 16
      %v904 = vpop.permute.xlu0 %903
      %905 = vrot.lane.b32.xlu0 %v444, 16
      %v906 = vpop.permute.xlu0 %905
      %907 = vrot.lane.b32.xlu0 %v447, 16
      %v908 = vpop.permute.xlu0 %907
      %909 = vrot.lane.b32.xlu0 %v449, 16
      %v910 = vpop.permute.xlu0 %909
      %911 = vrot.lane.b32.xlu0 %v452, 16
      %v912 = vpop.permute.xlu0 %911
      %913 = vrot.lane.b32.xlu0 %v454, 16
      %v914 = vpop.permute.xlu0 %913
      %915 = vrot.lane.b32.xlu0 %v457, 16
      %v916 = vpop.permute.xlu0 %915
      %917 = vrot.lane.b32.xlu0 %v459, 16
      %v918 = vpop.permute.xlu0 %917
      %919 = vrot.lane.b32.xlu0 %v462, 16
      %v920 = vpop.permute.xlu0 %919
      %921 = vrot.lane.b32.xlu0 %v464, 16
      %v922 = vpop.permute.xlu0 %921
      %923 = vrot.lane.b32.xlu0 %v467, 16
      %v924 = vpop.permute.xlu0 %923
      %925 = vrot.lane.b32.xlu0 %v469, 16
      %v926 = vpop.permute.xlu0 %925
      %927 = vrot.lane.b32.xlu0 %v472, 16
      %v928 = vpop.permute.xlu0 %927
      %929 = vrot.lane.b32.xlu0 %v474, 16
      %v930 = vpop.permute.xlu0 %929
      %931 = vrot.lane.b32.xlu0 %v477, 16
      %v932 = vpop.permute.xlu0 %931
      %933 = vrot.lane.b32.xlu0 %v479, 16
      %v934 = vpop.permute.xlu0 %933
      %935 = vrot.lane.b32.xlu0 %v566, 16
      %v936 = vpop.permute.xlu0 %935
      %937 = vrot.lane.b32.xlu0 %v568, 16
      %v938 = vpop.permute.xlu0 %937
      %971 = vrot.lane.b32.xlu0 %v488, 20
      %v972 = vpop.permute.xlu0 %971
      %973 = vrot.lane.b32.xlu0 %v490, 20
      %v974 = vpop.permute.xlu0 %973
      %975 = vrot.lane.b32.xlu0 %v493, 20
      %v976 = vpop.permute.xlu0 %975
      %977 = vrot.lane.b32.xlu0 %v495, 20
      %v978 = vpop.permute.xlu0 %977
      %979 = vrot.lane.b32.xlu0 %v498, 20
      %v980 = vpop.permute.xlu0 %979
      %981 = vrot.lane.b32.xlu0 %v500, 20
      %v982 = vpop.permute.xlu0 %981
      %983 = vrot.lane.b32.xlu0 %v503, 20
      %v984 = vpop.permute.xlu0 %983
      %985 = vrot.lane.b32.xlu0 %v505, 20
      %v986 = vpop.permute.xlu0 %985
      %987 = vrot.lane.b32.xlu0 %v508, 20
      %v988 = vpop.permute.xlu0 %987
      %989 = vrot.lane.b32.xlu0 %v510, 20
      %v990 = vpop.permute.xlu0 %989
      %991 = vrot.lane.b32.xlu0 %v513, 20
      %v992 = vpop.permute.xlu0 %991
      %993 = vrot.lane.b32.xlu0 %v515, 20
      %v994 = vpop.permute.xlu0 %993
      %995 = vrot.lane.b32.xlu0 %v518, 20
      %v996 = vpop.permute.xlu0 %995
      %997 = vrot.lane.b32.xlu0 %v520, 20
      %v998 = vpop.permute.xlu0 %997
      %999 = vrot.lane.b32.xlu0 %v523, 20
      %v1000 = vpop.permute.xlu0 %999
      %1001 = vrot.lane.b32.xlu0 %v525, 20
      %v1002 = vpop.permute.xlu0 %1001
      %1003 = vrot.lane.b32.xlu0 %v528, 20
      %v1004 = vpop.permute.xlu0 %1003
      %1005 = vrot.lane.b32.xlu0 %v530, 20
      %v1006 = vpop.permute.xlu0 %1005
      %1007 = vrot.lane.b32.xlu0 %v533, 20
      %v1008 = vpop.permute.xlu0 %1007
      %1009 = vrot.lane.b32.xlu0 %v535, 20
      %v1010 = vpop.permute.xlu0 %1009
      %1011 = vrot.lane.b32.xlu0 %v538, 20
      %v1012 = vpop.permute.xlu0 %1011
      %1013 = vrot.lane.b32.xlu0 %v540, 20
      %v1014 = vpop.permute.xlu0 %1013
      %1015 = vrot.lane.b32.xlu0 %v543, 20
      %v1016 = vpop.permute.xlu0 %1015
      %1017 = vrot.lane.b32.xlu0 %v545, 20
      %v1018 = vpop.permute.xlu0 %1017
      %1019 = vrot.lane.b32.xlu0 %v548, 20
      %v1020 = vpop.permute.xlu0 %1019
      %1021 = vrot.lane.b32.xlu0 %v550, 20
      %v1022 = vpop.permute.xlu0 %1021
      %1023 = vrot.lane.b32.xlu0 %v553, 20
      %v1024 = vpop.permute.xlu0 %1023
      %1025 = vrot.lane.b32.xlu0 %v555, 20
      %v1026 = vpop.permute.xlu0 %1025
      %1027 = vrot.lane.b32.xlu0 %v558, 20
      %v1028 = vpop.permute.xlu0 %1027
      %1029 = vrot.lane.b32.xlu0 %v560, 20
      %v1030 = vpop.permute.xlu0 %1029
      %1031 = vrot.lane.b32.xlu0 %v571, 20
      %v1032 = vpop.permute.xlu0 %1031
      %1033 = vrot.lane.b32.xlu0 %v573, 20
      %v1034 = vpop.permute.xlu0 %1033
      %1067 = vrot.lane.b32.xlu0 %v303, 24
      %v1068 = vpop.permute.xlu0 %1067
      %1069 = vrot.lane.b32.xlu0 %v304, 24
      %v1070 = vpop.permute.xlu0 %1069
      %1071 = vrot.lane.b32.xlu0 %v306, 24
      %v1072 = vpop.permute.xlu0 %1071
      %1073 = vrot.lane.b32.xlu0 %v307, 24
      %v1074 = vpop.permute.xlu0 %1073
      %1075 = vrot.lane.b32.xlu0 %v309, 24
      %v1076 = vpop.permute.xlu0 %1075
      %1077 = vrot.lane.b32.xlu0 %v310, 24
      %v1078 = vpop.permute.xlu0 %1077
      %1079 = vrot.lane.b32.xlu0 %v312, 24
      %v1080 = vpop.permute.xlu0 %1079
      %1081 = vrot.lane.b32.xlu0 %v313, 24
      %v1082 = vpop.permute.xlu0 %1081
      %1083 = vrot.lane.b32.xlu0 %v315, 24
      %v1084 = vpop.permute.xlu0 %1083
      %1085 = vrot.lane.b32.xlu0 %v316, 24
      %v1086 = vpop.permute.xlu0 %1085
      %1087 = vrot.lane.b32.xlu0 %v318, 24
      %v1088 = vpop.permute.xlu0 %1087
      %1089 = vrot.lane.b32.xlu0 %v319, 24
      %v1090 = vpop.permute.xlu0 %1089
      %1091 = vrot.lane.b32.xlu0 %v321, 24
      %v1092 = vpop.permute.xlu0 %1091
      %1093 = vrot.lane.b32.xlu0 %v322, 24
      %v1094 = vpop.permute.xlu0 %1093
      %1095 = vrot.lane.b32.xlu0 %v324, 24
      %v1096 = vpop.permute.xlu0 %1095
      %1097 = vrot.lane.b32.xlu0 %v325, 24
      %v1098 = vpop.permute.xlu0 %1097
      %1099 = vrot.lane.b32.xlu0 %v327, 24
      %v1100 = vpop.permute.xlu0 %1099
      %1101 = vrot.lane.b32.xlu0 %v328, 24
      %v1102 = vpop.permute.xlu0 %1101
      %1103 = vrot.lane.b32.xlu0 %v330, 24
      %v1104 = vpop.permute.xlu0 %1103
      %1105 = vrot.lane.b32.xlu0 %v331, 24
      %v1106 = vpop.permute.xlu0 %1105
      %1107 = vrot.lane.b32.xlu0 %v333, 24
      %v1108 = vpop.permute.xlu0 %1107
      %1109 = vrot.lane.b32.xlu0 %v334, 24
      %v1110 = vpop.permute.xlu0 %1109
      %1111 = vrot.lane.b32.xlu0 %v336, 24
      %v1112 = vpop.permute.xlu0 %1111
      %1113 = vrot.lane.b32.xlu0 %v337, 24
      %v1114 = vpop.permute.xlu0 %1113
      %1115 = vrot.lane.b32.xlu0 %v339, 24
      %v1116 = vpop.permute.xlu0 %1115
      %1117 = vrot.lane.b32.xlu0 %v340, 24
      %v1118 = vpop.permute.xlu0 %1117
      %1119 = vrot.lane.b32.xlu0 %v342, 24
      %v1120 = vpop.permute.xlu0 %1119
      %1121 = vrot.lane.b32.xlu0 %v343, 24
      %v1122 = vpop.permute.xlu0 %1121
      %1123 = vrot.lane.b32.xlu0 %v345, 24
      %v1124 = vpop.permute.xlu0 %1123
      %1125 = vrot.lane.b32.xlu0 %v346, 24
      %v1126 = vpop.permute.xlu0 %1125
      %1127 = vrot.lane.b32.xlu0 %v348, 24
      %v1128 = vpop.permute.xlu0 %1127
      %1129 = vrot.lane.b32.xlu0 %v349, 24
      %v1130 = vpop.permute.xlu0 %1129
      %1163 = vrot.lane.b32.xlu0 %v412, 28
      %v1164 = vpop.permute.xlu0 %1163
      %1165 = vrot.lane.b32.xlu0 %v414, 28
      %v1166 = vpop.permute.xlu0 %1165
      %1167 = vrot.lane.b32.xlu0 %v417, 28
      %v1168 = vpop.permute.xlu0 %1167
      %1169 = vrot.lane.b32.xlu0 %v419, 28
      %v1170 = vpop.permute.xlu0 %1169
      %1171 = vrot.lane.b32.xlu0 %v422, 28
      %v1172 = vpop.permute.xlu0 %1171
      %1173 = vrot.lane.b32.xlu0 %v424, 28
      %v1174 = vpop.permute.xlu0 %1173
      %1175 = vrot.lane.b32.xlu0 %v427, 28
      %v1176 = vpop.permute.xlu0 %1175
      %1177 = vrot.lane.b32.xlu0 %v429, 28
      %v1178 = vpop.permute.xlu0 %1177
      %1179 = vrot.lane.b32.xlu0 %v432, 28
      %v1180 = vpop.permute.xlu0 %1179
      %1181 = vrot.lane.b32.xlu0 %v434, 28
      %v1182 = vpop.permute.xlu0 %1181
      %1183 = vrot.lane.b32.xlu0 %v437, 28
      %v1184 = vpop.permute.xlu0 %1183
      %1185 = vrot.lane.b32.xlu0 %v439, 28
      %v1186 = vpop.permute.xlu0 %1185
      %1187 = vrot.lane.b32.xlu0 %v442, 28
      %v1188 = vpop.permute.xlu0 %1187
      %1189 = vrot.lane.b32.xlu0 %v444, 28
      %v1190 = vpop.permute.xlu0 %1189
      %1191 = vrot.lane.b32.xlu0 %v447, 28
      %v1192 = vpop.permute.xlu0 %1191
      %1193 = vrot.lane.b32.xlu0 %v449, 28
      %v1194 = vpop.permute.xlu0 %1193
      %1195 = vrot.lane.b32.xlu0 %v452, 28
      %v1196 = vpop.permute.xlu0 %1195
      %1197 = vrot.lane.b32.xlu0 %v454, 28
      %v1198 = vpop.permute.xlu0 %1197
      %1199 = vrot.lane.b32.xlu0 %v457, 28
      %v1200 = vpop.permute.xlu0 %1199
      %1201 = vrot.lane.b32.xlu0 %v459, 28
      %v1202 = vpop.permute.xlu0 %1201
      %1203 = vrot.lane.b32.xlu0 %v462, 28
      %v1204 = vpop.permute.xlu0 %1203
      %1205 = vrot.lane.b32.xlu0 %v464, 28
      %v1206 = vpop.permute.xlu0 %1205
      %1207 = vrot.lane.b32.xlu0 %v467, 28
      %v1208 = vpop.permute.xlu0 %1207
      %1209 = vrot.lane.b32.xlu0 %v469, 28
      %v1210 = vpop.permute.xlu0 %1209
      %1211 = vrot.lane.b32.xlu0 %v472, 28
      %v1212 = vpop.permute.xlu0 %1211
      %1213 = vrot.lane.b32.xlu0 %v474, 28
      %v1214 = vpop.permute.xlu0 %1213
      %1215 = vrot.lane.b32.xlu0 %v477, 28
      %v1216 = vpop.permute.xlu0 %1215
      %1217 = vrot.lane.b32.xlu0 %v479, 28
      %v1218 = vpop.permute.xlu0 %1217
      %1219 = vrot.lane.b32.xlu0 %v566, 28
      %v1220 = vpop.permute.xlu0 %1219
      %1221 = vrot.lane.b32.xlu0 %v568, 28
      %v1222 = vpop.permute.xlu0 %1221
      %1223 = vrot.lane.b32.xlu0 %v579, 28
      %v1224 = vpop.permute.xlu0 %1223
      %1225 = vrot.lane.b32.xlu0 %v581, 28
      %v1226 = vpop.permute.xlu0 %1225
      %1259 = vrot.lane.b32.xlu0 %v493, 32
      %v1260 = vpop.permute.xlu0 %1259
      %1261 = vrot.lane.b32.xlu0 %v495, 32
      %v1262 = vpop.permute.xlu0 %1261
      %1263 = vrot.lane.b32.xlu0 %v498, 32
      %v1264 = vpop.permute.xlu0 %1263
      %1265 = vrot.lane.b32.xlu0 %v500, 32
      %v1266 = vpop.permute.xlu0 %1265
      %1267 = vrot.lane.b32.xlu0 %v503, 32
      %v1268 = vpop.permute.xlu0 %1267
      %1269 = vrot.lane.b32.xlu0 %v505, 32
      %v1270 = vpop.permute.xlu0 %1269
      %1271 = vrot.lane.b32.xlu0 %v508, 32
      %v1272 = vpop.permute.xlu0 %1271
      %1273 = vrot.lane.b32.xlu0 %v510, 32
      %v1274 = vpop.permute.xlu0 %1273
      %1275 = vrot.lane.b32.xlu0 %v513, 32
      %v1276 = vpop.permute.xlu0 %1275
      %1277 = vrot.lane.b32.xlu0 %v515, 32
      %v1278 = vpop.permute.xlu0 %1277
      %1279 = vrot.lane.b32.xlu0 %v518, 32
      %v1280 = vpop.permute.xlu0 %1279
      %1281 = vrot.lane.b32.xlu0 %v520, 32
      %v1282 = vpop.permute.xlu0 %1281
      %1283 = vrot.lane.b32.xlu0 %v523, 32
      %v1284 = vpop.permute.xlu0 %1283
      %1285 = vrot.lane.b32.xlu0 %v525, 32
      %v1286 = vpop.permute.xlu0 %1285
      %1287 = vrot.lane.b32.xlu0 %v528, 32
      %v1288 = vpop.permute.xlu0 %1287
      %1289 = vrot.lane.b32.xlu0 %v530, 32
      %v1290 = vpop.permute.xlu0 %1289
      %1291 = vrot.lane.b32.xlu0 %v533, 32
      %v1292 = vpop.permute.xlu0 %1291
      %1293 = vrot.lane.b32.xlu0 %v535, 32
      %v1294 = vpop.permute.xlu0 %1293
      %1295 = vrot.lane.b32.xlu0 %v538, 32
      %v1296 = vpop.permute.xlu0 %1295
      %1297 = vrot.lane.b32.xlu0 %v540, 32
      %v1298 = vpop.permute.xlu0 %1297
      %1299 = vrot.lane.b32.xlu0 %v543, 32
      %v1300 = vpop.permute.xlu0 %1299
      %1301 = vrot.lane.b32.xlu0 %v545, 32
      %v1302 = vpop.permute.xlu0 %1301
      %1303 = vrot.lane.b32.xlu0 %v548, 32
      %v1304 = vpop.permute.xlu0 %1303
      %1305 = vrot.lane.b32.xlu0 %v550, 32
      %v1306 = vpop.permute.xlu0 %1305
      %1307 = vrot.lane.b32.xlu0 %v553, 32
      %v1308 = vpop.permute.xlu0 %1307
      %1309 = vrot.lane.b32.xlu0 %v555, 32
      %v1310 = vpop.permute.xlu0 %1309
      %1311 = vrot.lane.b32.xlu0 %v558, 32
      %v1312 = vpop.permute.xlu0 %1311
      %1313 = vrot.lane.b32.xlu0 %v560, 32
      %v1314 = vpop.permute.xlu0 %1313
      %1315 = vrot.lane.b32.xlu0 %v571, 32
      %v1316 = vpop.permute.xlu0 %1315
      %1317 = vrot.lane.b32.xlu0 %v573, 32
      %v1318 = vpop.permute.xlu0 %1317
      %1319 = vrot.lane.b32.xlu0 %v584, 32
      %v1320 = vpop.permute.xlu0 %1319
      %1321 = vrot.lane.b32.xlu0 %v586, 32
      %v1322 = vpop.permute.xlu0 %1321
      %vm1355 = vcmask 31744
      %v1356 = vsel %vm1355, %v297, %v588
      %v1357 = vsel %vm1355, %v298, %v590
      %v1358 = vsel %vm1355, %v300, %v592
      %v1359 = vsel %vm1355, %v301, %v594
      %v1360 = vsel %vm1355, %v303, %v596
      %v1361 = vsel %vm1355, %v304, %v598
      %v1362 = vsel %vm1355, %v306, %v600
      %v1363 = vsel %vm1355, %v307, %v602
      %v1364 = vsel %vm1355, %v309, %v604
      %v1365 = vsel %vm1355, %v310, %v606
      %v1366 = vsel %vm1355, %v312, %v608
      %v1367 = vsel %vm1355, %v313, %v610
      %v1368 = vsel %vm1355, %v315, %v612
      %v1369 = vsel %vm1355, %v316, %v614
      %v1370 = vsel %vm1355, %v318, %v616
      %v1371 = vsel %vm1355, %v319, %v618
      %v1372 = vsel %vm1355, %v321, %v620
      %v1373 = vsel %vm1355, %v322, %v622
      %v1374 = vsel %vm1355, %v324, %v624
      %v1375 = vsel %vm1355, %v325, %v626
      %v1376 = vsel %vm1355, %v327, %v628
      %v1377 = vsel %vm1355, %v328, %v630
      %v1378 = vsel %vm1355, %v330, %v632
      %v1379 = vsel %vm1355, %v331, %v634
      %v1380 = vsel %vm1355, %v333, %v636
      %v1381 = vsel %vm1355, %v334, %v638
      %v1382 = vsel %vm1355, %v336, %v640
      %v1383 = vsel %vm1355, %v337, %v642
      %v1384 = vsel %vm1355, %v339, %v644
      %v1385 = vsel %vm1355, %v340, %v646
      %v1386 = vsel %vm1355, %v342, %v648
      %v1387 = vsel %vm1355, %v343, %v650
      %vm1388 = vcmask 64512
      %v1389 = vsel %vm1388, %v1356, %v684
      %v1390 = vsel %vm1388, %v1357, %v686
      %v1391 = vsel %vm1388, %v1358, %v688
      %v1392 = vsel %vm1388, %v1359, %v690
      %v1393 = vsel %vm1388, %v1360, %v692
      %v1394 = vsel %vm1388, %v1361, %v694
      %v1395 = vsel %vm1388, %v1362, %v696
      %v1396 = vsel %vm1388, %v1363, %v698
      %v1397 = vsel %vm1388, %v1364, %v700
      %v1398 = vsel %vm1388, %v1365, %v702
      %v1399 = vsel %vm1388, %v1366, %v704
      %v1400 = vsel %vm1388, %v1367, %v706
      %v1401 = vsel %vm1388, %v1368, %v708
      %v1402 = vsel %vm1388, %v1369, %v710
      %v1403 = vsel %vm1388, %v1370, %v712
      %v1404 = vsel %vm1388, %v1371, %v714
      %v1405 = vsel %vm1388, %v1372, %v716
      %v1406 = vsel %vm1388, %v1373, %v718
      %v1407 = vsel %vm1388, %v1374, %v720
      %v1408 = vsel %vm1388, %v1375, %v722
      %v1409 = vsel %vm1388, %v1376, %v724
      %v1410 = vsel %vm1388, %v1377, %v726
      %v1411 = vsel %vm1388, %v1378, %v728
      %v1412 = vsel %vm1388, %v1379, %v730
      %v1413 = vsel %vm1388, %v1380, %v732
      %v1414 = vsel %vm1388, %v1381, %v734
      %v1415 = vsel %vm1388, %v1382, %v736
      %v1416 = vsel %vm1388, %v1383, %v738
      %v1417 = vsel %vm1388, %v1384, %v740
      %v1418 = vsel %vm1388, %v1385, %v742
      %v1419 = vsel %vm1388, %v1386, %v744
      %v1420 = vsel %vm1388, %v1387, %v746
      %vm1421 = vcmask 97280
      %v1422 = vsel %vm1421, %v1389, %v780
      %v1423 = vsel %vm1421, %v1390, %v782
      %v1424 = vsel %vm1421, %v1391, %v784
      %v1425 = vsel %vm1421, %v1392, %v786
      %v1426 = vsel %vm1421, %v1393, %v788
      %v1427 = vsel %vm1421, %v1394, %v790
      %v1428 = vsel %vm1421, %v1395, %v792
      %v1429 = vsel %vm1421, %v1396, %v794
      %v1430 = vsel %vm1421, %v1397, %v796
      %v1431 = vsel %vm1421, %v1398, %v798
      %v1432 = vsel %vm1421, %v1399, %v800
      %v1433 = vsel %vm1421, %v1400, %v802
      %v1434 = vsel %vm1421, %v1401, %v804
      %v1435 = vsel %vm1421, %v1402, %v806
      %v1436 = vsel %vm1421, %v1403, %v808
      %v1437 = vsel %vm1421, %v1404, %v810
      %v1438 = vsel %vm1421, %v1405, %v812
      %v1439 = vsel %vm1421, %v1406, %v814
      %v1440 = vsel %vm1421, %v1407, %v816
      %v1441 = vsel %vm1421, %v1408, %v818
      %v1442 = vsel %vm1421, %v1409, %v820
      %v1443 = vsel %vm1421, %v1410, %v822
      %v1444 = vsel %vm1421, %v1411, %v824
      %v1445 = vsel %vm1421, %v1412, %v826
      %v1446 = vsel %vm1421, %v1413, %v828
      %v1447 = vsel %vm1421, %v1414, %v830
      %v1448 = vsel %vm1421, %v1415, %v832
      %v1449 = vsel %vm1421, %v1416, %v834
      %v1450 = vsel %vm1421, %v1417, %v836
      %v1451 = vsel %vm1421, %v1418, %v838
      %v1452 = vsel %vm1421, %v1419, %v840
      %v1453 = vsel %vm1421, %v1420, %v842
      %vm1454 = vcmask 130048
      %v1455 = vsel %vm1454, %v1422, %v876
      %v1456 = vsel %vm1454, %v1423, %v878
      %v1457 = vsel %vm1454, %v1424, %v880
      %v1458 = vsel %vm1454, %v1425, %v882
      %v1459 = vsel %vm1454, %v1426, %v884
      %v1460 = vsel %vm1454, %v1427, %v886
      %v1461 = vsel %vm1454, %v1428, %v888
      %v1462 = vsel %vm1454, %v1429, %v890
      %v1463 = vsel %vm1454, %v1430, %v892
      %v1464 = vsel %vm1454, %v1431, %v894
      %v1465 = vsel %vm1454, %v1432, %v896
      %v1466 = vsel %vm1454, %v1433, %v898
      %v1467 = vsel %vm1454, %v1434, %v900
      %v1468 = vsel %vm1454, %v1435, %v902
      %v1469 = vsel %vm1454, %v1436, %v904
      %v1470 = vsel %vm1454, %v1437, %v906
      %v1471 = vsel %vm1454, %v1438, %v908
      %v1472 = vsel %vm1454, %v1439, %v910
      %v1473 = vsel %vm1454, %v1440, %v912
      %v1474 = vsel %vm1454, %v1441, %v914
      %v1475 = vsel %vm1454, %v1442, %v916
      %v1476 = vsel %vm1454, %v1443, %v918
      %v1477 = vsel %vm1454, %v1444, %v920
      %v1478 = vsel %vm1454, %v1445, %v922
      %v1479 = vsel %vm1454, %v1446, %v924
      %v1480 = vsel %vm1454, %v1447, %v926
      %v1481 = vsel %vm1454, %v1448, %v928
      %v1482 = vsel %vm1454, %v1449, %v930
      %v1483 = vsel %vm1454, %v1450, %v932
      %v1484 = vsel %vm1454, %v1451, %v934
      %v1485 = vsel %vm1454, %v1452, %v936
      %v1486 = vsel %vm1454, %v1453, %v938
      %vm1487 = vcmask 162816
      %v1488 = vsel %vm1487, %v1455, %v972
      %v1489 = vsel %vm1487, %v1456, %v974
      %v1490 = vsel %vm1487, %v1457, %v976
      %v1491 = vsel %vm1487, %v1458, %v978
      %v1492 = vsel %vm1487, %v1459, %v980
      %v1493 = vsel %vm1487, %v1460, %v982
      %v1494 = vsel %vm1487, %v1461, %v984
      %v1495 = vsel %vm1487, %v1462, %v986
      %v1496 = vsel %vm1487, %v1463, %v988
      %v1497 = vsel %vm1487, %v1464, %v990
      %v1498 = vsel %vm1487, %v1465, %v992
      %v1499 = vsel %vm1487, %v1466, %v994
      %v1500 = vsel %vm1487, %v1467, %v996
      %v1501 = vsel %vm1487, %v1468, %v998
      %v1502 = vsel %vm1487, %v1469, %v1000
      %v1503 = vsel %vm1487, %v1470, %v1002
      %v1504 = vsel %vm1487, %v1471, %v1004
      %v1505 = vsel %vm1487, %v1472, %v1006
      %v1506 = vsel %vm1487, %v1473, %v1008
      %v1507 = vsel %vm1487, %v1474, %v1010
      %v1508 = vsel %vm1487, %v1475, %v1012
      %v1509 = vsel %vm1487, %v1476, %v1014
      %v1510 = vsel %vm1487, %v1477, %v1016
      %v1511 = vsel %vm1487, %v1478, %v1018
      %v1512 = vsel %vm1487, %v1479, %v1020
      %v1513 = vsel %vm1487, %v1480, %v1022
      %v1514 = vsel %vm1487, %v1481, %v1024
      %v1515 = vsel %vm1487, %v1482, %v1026
      %v1516 = vsel %vm1487, %v1483, %v1028
      %v1517 = vsel %vm1487, %v1484, %v1030
      %v1518 = vsel %vm1487, %v1485, %v1032
      %v1519 = vsel %vm1487, %v1486, %v1034
      %vm1520 = vcmask 195584
      %v1521 = vsel %vm1520, %v1488, %v1068
      %v1522 = vsel %vm1520, %v1489, %v1070
      %v1523 = vsel %vm1520, %v1490, %v1072
      %v1524 = vsel %vm1520, %v1491, %v1074
      %v1525 = vsel %vm1520, %v1492, %v1076
      %v1526 = vsel %vm1520, %v1493, %v1078
      %v1527 = vsel %vm1520, %v1494, %v1080
      %v1528 = vsel %vm1520, %v1495, %v1082
      %v1529 = vsel %vm1520, %v1496, %v1084
      %v1530 = vsel %vm1520, %v1497, %v1086
      %v1531 = vsel %vm1520, %v1498, %v1088
      %v1532 = vsel %vm1520, %v1499, %v1090
      %v1533 = vsel %vm1520, %v1500, %v1092
      %v1534 = vsel %vm1520, %v1501, %v1094
      %v1535 = vsel %vm1520, %v1502, %v1096
      %v1536 = vsel %vm1520, %v1503, %v1098
      %v1537 = vsel %vm1520, %v1504, %v1100
      %v1538 = vsel %vm1520, %v1505, %v1102
      %v1539 = vsel %vm1520, %v1506, %v1104
      %v1540 = vsel %vm1520, %v1507, %v1106
      %v1541 = vsel %vm1520, %v1508, %v1108
      %v1542 = vsel %vm1520, %v1509, %v1110
      %v1543 = vsel %vm1520, %v1510, %v1112
      %v1544 = vsel %vm1520, %v1511, %v1114
      %v1545 = vsel %vm1520, %v1512, %v1116
      %v1546 = vsel %vm1520, %v1513, %v1118
      %v1547 = vsel %vm1520, %v1514, %v1120
      %v1548 = vsel %vm1520, %v1515, %v1122
      %v1549 = vsel %vm1520, %v1516, %v1124
      %v1550 = vsel %vm1520, %v1517, %v1126
      %v1551 = vsel %vm1520, %v1518, %v1128
      %v1552 = vsel %vm1520, %v1519, %v1130
      %vm1553 = vcmask 228352
      %v1554 = vsel %vm1553, %v1521, %v1164
      %v1555 = vsel %vm1553, %v1522, %v1166
      %v1556 = vsel %vm1553, %v1523, %v1168
      %v1557 = vsel %vm1553, %v1524, %v1170
      %v1558 = vsel %vm1553, %v1525, %v1172
      %v1559 = vsel %vm1553, %v1526, %v1174
      %v1560 = vsel %vm1553, %v1527, %v1176
      %v1561 = vsel %vm1553, %v1528, %v1178
      %v1562 = vsel %vm1553, %v1529, %v1180
      %v1563 = vsel %vm1553, %v1530, %v1182
      %v1564 = vsel %vm1553, %v1531, %v1184
      %v1565 = vsel %vm1553, %v1532, %v1186
      %v1566 = vsel %vm1553, %v1533, %v1188
      %v1567 = vsel %vm1553, %v1534, %v1190
      %v1568 = vsel %vm1553, %v1535, %v1192
      %v1569 = vsel %vm1553, %v1536, %v1194
      %v1570 = vsel %vm1553, %v1537, %v1196
      %v1571 = vsel %vm1553, %v1538, %v1198
      %v1572 = vsel %vm1553, %v1539, %v1200
      %v1573 = vsel %vm1553, %v1540, %v1202
      %v1574 = vsel %vm1553, %v1541, %v1204
      %v1575 = vsel %vm1553, %v1542, %v1206
      %v1576 = vsel %vm1553, %v1543, %v1208
      %v1577 = vsel %vm1553, %v1544, %v1210
      %v1578 = vsel %vm1553, %v1545, %v1212
      %v1579 = vsel %vm1553, %v1546, %v1214
      %v1580 = vsel %vm1553, %v1547, %v1216
      %v1581 = vsel %vm1553, %v1548, %v1218
      %v1582 = vsel %vm1553, %v1549, %v1220
      %v1583 = vsel %vm1553, %v1550, %v1222
      %v1584 = vsel %vm1553, %v1551, %v1224
      %v1585 = vsel %vm1553, %v1552, %v1226
      %vm1586 = vcmask 261120
      %v1587 = vsel %vm1586, %v1554, %v1260
      %v1588 = vsel %vm1586, %v1555, %v1262
      %v1589 = vsel %vm1586, %v1556, %v1264
      %v1590 = vsel %vm1586, %v1557, %v1266
      %v1591 = vsel %vm1586, %v1558, %v1268
      %v1592 = vsel %vm1586, %v1559, %v1270
      %v1593 = vsel %vm1586, %v1560, %v1272
      %v1594 = vsel %vm1586, %v1561, %v1274
      %v1595 = vsel %vm1586, %v1562, %v1276
      %v1596 = vsel %vm1586, %v1563, %v1278
      %v1597 = vsel %vm1586, %v1564, %v1280
      %v1598 = vsel %vm1586, %v1565, %v1282
      %v1599 = vsel %vm1586, %v1566, %v1284
      %v1600 = vsel %vm1586, %v1567, %v1286
      %v1601 = vsel %vm1586, %v1568, %v1288
      %v1602 = vsel %vm1586, %v1569, %v1290
      %v1603 = vsel %vm1586, %v1570, %v1292
      %v1604 = vsel %vm1586, %v1571, %v1294
      %v1605 = vsel %vm1586, %v1572, %v1296
      %v1606 = vsel %vm1586, %v1573, %v1298
      %v1607 = vsel %vm1586, %v1574, %v1300
      %v1608 = vsel %vm1586, %v1575, %v1302
      %v1609 = vsel %vm1586, %v1576, %v1304
      %v1610 = vsel %vm1586, %v1577, %v1306
      %v1611 = vsel %vm1586, %v1578, %v1308
      %v1612 = vsel %vm1586, %v1579, %v1310
      %v1613 = vsel %vm1586, %v1580, %v1312
      %v1614 = vsel %vm1586, %v1581, %v1314
      %v1615 = vsel %vm1586, %v1582, %v1316
      %v1616 = vsel %vm1586, %v1583, %v1318
      %v1617 = vsel %vm1586, %v1584, %v1320
      %v1618 = vsel %vm1586, %v1585, %v1322
      %v1619 = vpack.c.bf16 %v1588, %v1587
      %v1620 = vpack.c.bf16 %v1590, %v1589
      %v1621 = vpack.c.bf16 %v1592, %v1591
      %v1622 = vpack.c.bf16 %v1594, %v1593
      %v1623 = vpack.c.bf16 %v1596, %v1595
      %v1624 = vpack.c.bf16 %v1598, %v1597
      %v1625 = vpack.c.bf16 %v1600, %v1599
      %v1626 = vpack.c.bf16 %v1602, %v1601
      %v1627 = vpack.c.bf16 %v1604, %v1603
      %v1628 = vpack.c.bf16 %v1606, %v1605
      %v1629 = vpack.c.bf16 %v1608, %v1607
      %v1630 = vpack.c.bf16 %v1610, %v1609
      %v1631 = vpack.c.bf16 %v1612, %v1611
      %v1632 = vpack.c.bf16 %v1614, %v1613
      %v1633 = vpack.c.bf16 %v1616, %v1615
      %v1634 = vpack.c.bf16 %v1618, %v1617
      %v1635 = vld [vmem:[%s1] sm:$0xf]
      %v1636 = vld [vmem:[%s1 + $0x4] sm:$0xf]
      %v1637 = vld [vmem:[%s1 + $0x8] sm:$0xf]
      %v1638 = vld [vmem:[%s1 + $0xc] sm:$0xf]
      %v1639 = vld [vmem:[%s1 + $0x10] sm:$0x3]
      %v1640 = vld [vmem:[%s2] sm:$0x1]
      %v1642 = vlaneseq
      %v1643 = vshrl.u32 %v1642, 7
      %v1644 = vsub.s32 0, %v1643
      %v1645 = vrot.slane %v1640, %v1644
      %v1652 = vunpack.c.l.b16 %v1635
      %v1653 = vunpack.c.l.b16 %v1636
      %v1654 = vunpack.c.l.b16 %v1637
      %v1655 = vunpack.c.l.b16 %v1638
      %v1656 = vunpack.c.l.b16 %v1639
      %v1657 = vpack.c.b16 %v1653, %v1652
      %v1658 = vpack.c.b16 %v1655, %v1654
      %v1659 = vpack.c.b16 %v1656, %v1656
      %vm1662 = vcmask 293888
      %v1664 = vsel %vm1662, %v1619, 0
      %v1667 = vsel %vm1662, %v1620, 0
      %v1670 = vsel %vm1662, %v1621, 0
      %v1673 = vsel %vm1662, %v1622, 0
      %v1676 = vsel %vm1662, %v1623, 0
      %v1679 = vsel %vm1662, %v1624, 0
      %v1682 = vsel %vm1662, %v1625, 0
      %v1685 = vsel %vm1662, %v1626, 0
      %v1688 = vsel %vm1662, %v1627, 0
      %v1691 = vsel %vm1662, %v1628, 0
      %v1694 = vsel %vm1662, %v1629, 0
      %v1697 = vsel %vm1662, %v1630, 0
      %v1700 = vsel %vm1662, %v1631, 0
      %v1703 = vsel %vm1662, %v1632, 0
      %v1706 = vsel %vm1662, %v1633, 0
      %v1709 = vsel %vm1662, %v1634, 0
      %vm1711 = vcmask 1041408
      %v1713 = vsel %vm1711, %v1659, 0
      %1715 = vmatprep.subr.bf16.mxu0 0
      %1716 = vmatpush1.bf16.msra.mxu0 %v1657
      %1717 = vmatprep.subr.bf16.mxu0 0
      %1718 = vmatpush1.bf16.msra.mxu0 %v1658
      %1719 = vmatprep.subr.bf16.mxu0 0
      %1720 = vmatpush1.bf16.msra.mxu0 %v1713
      %1721 = vmatprep.subr.bf16.mxu0 0
      %1722 = vmatpush1.bf16.msra.mxu0 0
      %1723 = vmatprep.subr.bf16.mxu0 0
      %1724 = vmatpush1.bf16.msra.mxu0 0
      %1725 = vmatprep.subr.bf16.mxu0 0
      %1726 = vmatpush1.bf16.msra.mxu0 0
      %1727 = vmatprep.subr.bf16.mxu0 0
      %1728 = vmatpush1.bf16.msra.mxu0 0
      %1729 = vmatprep.subr.bf16.mxu0 0
      %1730 = vmatpush1.bf16.msra.mxu0 0
      %1731 = vmatprep.subr.bf16.mxu0 0
      %1732 = vmatpush1.bf16.msra.mxu0 0
      %1733 = vmatprep.subr.bf16.mxu0 0
      %1734 = vmatpush1.bf16.msra.mxu0 0
      %1735 = vmatprep.subr.bf16.mxu0 0
      %1736 = vmatpush1.bf16.msra.mxu0 0
      %1737 = vmatprep.subr.bf16.mxu0 0
      %1738 = vmatpush1.bf16.msra.mxu0 0
      %1739 = vmatprep.subr.bf16.mxu0 0
      %1740 = vmatpush1.bf16.msra.mxu0 0
      %1741 = vmatprep.subr.bf16.mxu0 0
      %1742 = vmatpush1.bf16.msra.mxu0 0
      %1743 = vmatprep.subr.bf16.mxu0 0
      %1744 = vmatpush1.bf16.msra.mxu0 0
      %1745 = vmatprep.subr.bf16.mxu0 0
      %1746 = vmatpush1.bf16.msra.mxu0 0
      %1747 = vmatprep.mubr.bf16.mxu0 0
      %1748 = vmatmul.mubr.bf16.gmra.mrb[0].mxu0 %v1664
      %v1749 = vpop.f32.mrb[0].mxu0
      %v1750 = vadd.f32 %v1645, %v1749
      %v1751 = vpop.f32.mrb[0].mxu0
      %v1752 = vpop.f32.mrb[0].mxu0
      %v1753 = vadd.f32 %v1645, %v1752
      %v1754 = vpop.f32.mrb[0].mxu0
      %1755 = vmatprep.mubr.bf16.mxu0 0
      %1756 = vmatmul.mubr.bf16.gmra.mrb[0].mxu0 %v1667
      %v1757 = vpop.f32.mrb[0].mxu0
      %v1758 = vadd.f32 %v1645, %v1757
      %v1759 = vpop.f32.mrb[0].mxu0
      %v1760 = vpop.f32.mrb[0].mxu0
      %v1761 = vadd.f32 %v1645, %v1760
      %v1762 = vpop.f32.mrb[0].mxu0
      %1763 = vmatprep.mubr.bf16.mxu0 0
      %1764 = vmatmul.mubr.bf16.gmra.mrb[0].mxu0 %v1670
      %v1765 = vpop.f32.mrb[0].mxu0
      %v1766 = vadd.f32 %v1645, %v1765
      %v1767 = vpop.f32.mrb[0].mxu0
      %v1768 = vpop.f32.mrb[0].mxu0
      %v1769 = vadd.f32 %v1645, %v1768
      %v1770 = vpop.f32.mrb[0].mxu0
      %1771 = vmatprep.mubr.bf16.mxu0 0
      %1772 = vmatmul.mubr.bf16.gmra.mrb[0].mxu0 %v1673
      %v1773 = vpop.f32.mrb[0].mxu0
      %v1774 = vadd.f32 %v1645, %v1773
      %v1775 = vpop.f32.mrb[0].mxu0
      %v1776 = vpop.f32.mrb[0].mxu0
      %v1777 = vadd.f32 %v1645, %v1776
      %v1778 = vpop.f32.mrb[0].mxu0
      %1779 = vmatprep.mubr.bf16.mxu0 0
      %1780 = vmatmul.mubr.bf16.gmra.mrb[0].mxu0 %v1676
      %v1781 = vpop.f32.mrb[0].mxu0
      %v1782 = vadd.f32 %v1645, %v1781
      %v1783 = vpop.f32.mrb[0].mxu0
      %v1784 = vpop.f32.mrb[0].mxu0
      %v1785 = vadd.f32 %v1645, %v1784
      %v1786 = vpop.f32.mrb[0].mxu0
      %1787 = vmatprep.mubr.bf16.mxu0 0
      %1788 = vmatmul.mubr.bf16.gmra.mrb[0].mxu0 %v1679
      %v1789 = vpop.f32.mrb[0].mxu0
      %v1790 = vadd.f32 %v1645, %v1789
      %v1791 = vpop.f32.mrb[0].mxu0
      %v1792 = vpop.f32.mrb[0].mxu0
      %v1793 = vadd.f32 %v1645, %v1792
      %v1794 = vpop.f32.mrb[0].mxu0
      %1795 = vmatprep.mubr.bf16.mxu0 0
      %1796 = vmatmul.mubr.bf16.gmra.mrb[0].mxu0 %v1682
      %v1797 = vpop.f32.mrb[0].mxu0
      %v1798 = vadd.f32 %v1645, %v1797
      %v1799 = vpop.f32.mrb[0].mxu0
      %v1800 = vpop.f32.mrb[0].mxu0
      %v1801 = vadd.f32 %v1645, %v1800
      %v1802 = vpop.f32.mrb[0].mxu0
      %1803 = vmatprep.mubr.bf16.mxu0 0
      %1804 = vmatmul.mubr.bf16.gmra.mrb[0].mxu0 %v1685
      %v1805 = vpop.f32.mrb[0].mxu0
      %v1806 = vadd.f32 %v1645, %v1805
      %v1807 = vpop.f32.mrb[0].mxu0
      %v1808 = vpop.f32.mrb[0].mxu0
      %v1809 = vadd.f32 %v1645, %v1808
      %v1810 = vpop.f32.mrb[0].mxu0
      %1811 = vmatprep.mubr.bf16.mxu0 0
      %1812 = vmatmul.mubr.bf16.gmra.mrb[0].mxu0 %v1688
      %v1813 = vpop.f32.mrb[0].mxu0
      %v1814 = vadd.f32 %v1645, %v1813
      %v1815 = vpop.f32.mrb[0].mxu0
      %v1816 = vpop.f32.mrb[0].mxu0
      %v1817 = vadd.f32 %v1645, %v1816
      %v1818 = vpop.f32.mrb[0].mxu0
      %1819 = vmatprep.mubr.bf16.mxu0 0
      %1820 = vmatmul.mubr.bf16.gmra.mrb[0].mxu0 %v1691
      %v1821 = vpop.f32.mrb[0].mxu0
      %v1822 = vadd.f32 %v1645, %v1821
      %v1823 = vpop.f32.mrb[0].mxu0
      %v1824 = vpop.f32.mrb[0].mxu0
      %v1825 = vadd.f32 %v1645, %v1824
      %v1826 = vpop.f32.mrb[0].mxu0
      %1827 = vmatprep.mubr.bf16.mxu0 0
      %1828 = vmatmul.mubr.bf16.gmra.mrb[0].mxu0 %v1694
      %v1829 = vpop.f32.mrb[0].mxu0
      %v1830 = vadd.f32 %v1645, %v1829
      %v1831 = vpop.f32.mrb[0].mxu0
      %v1832 = vpop.f32.mrb[0].mxu0
      %v1833 = vadd.f32 %v1645, %v1832
      %v1834 = vpop.f32.mrb[0].mxu0
      %1835 = vmatprep.mubr.bf16.mxu0 0
      %1836 = vmatmul.mubr.bf16.gmra.mrb[0].mxu0 %v1697
      %v1837 = vpop.f32.mrb[0].mxu0
      %v1838 = vadd.f32 %v1645, %v1837
      %v1839 = vpop.f32.mrb[0].mxu0
      %v1840 = vpop.f32.mrb[0].mxu0
      %v1841 = vadd.f32 %v1645, %v1840
      %v1842 = vpop.f32.mrb[0].mxu0
      %1843 = vmatprep.mubr.bf16.mxu0 0
      %1844 = vmatmul.mubr.bf16.gmra.mrb[0].mxu0 %v1700
      %v1845 = vpop.f32.mrb[0].mxu0
      %v1846 = vadd.f32 %v1645, %v1845
      %v1847 = vpop.f32.mrb[0].mxu0
      %v1848 = vpop.f32.mrb[0].mxu0
      %v1849 = vadd.f32 %v1645, %v1848
      %v1850 = vpop.f32.mrb[0].mxu0
      %1851 = vmatprep.mubr.bf16.mxu0 0
      %1852 = vmatmul.mubr.bf16.gmra.mrb[0].mxu0 %v1703
      %v1853 = vpop.f32.mrb[0].mxu0
      %v1854 = vadd.f32 %v1645, %v1853
      %v1855 = vpop.f32.mrb[0].mxu0
      %v1856 = vpop.f32.mrb[0].mxu0
      %v1857 = vadd.f32 %v1645, %v1856
      %v1858 = vpop.f32.mrb[0].mxu0
      %1859 = vmatprep.mubr.bf16.mxu0 0
      %1860 = vmatmul.mubr.bf16.gmra.mrb[0].mxu0 %v1706
      %v1861 = vpop.f32.mrb[0].mxu0
      %v1862 = vadd.f32 %v1645, %v1861
      %v1863 = vpop.f32.mrb[0].mxu0
      %v1864 = vpop.f32.mrb[0].mxu0
      %v1865 = vadd.f32 %v1645, %v1864
      %v1866 = vpop.f32.mrb[0].mxu0
      %1867 = vmatprep.mubr.bf16.mxu0 0
      %1868 = vmatmul.mubr.bf16.gmra.mrb[0].mxu0 %v1709
      %v1869 = vpop.f32.mrb[0].mxu0
      %v1870 = vadd.f32 %v1645, %v1869
      %v1871 = vpop.f32.mrb[0].mxu0
      %v1872 = vpop.f32.mrb[0].mxu0
      %v1873 = vadd.f32 %v1645, %v1872
      %v1874 = vpop.f32.mrb[0].mxu0
      %1875 = vdwg.mxu0
      %1876 = vst.msk [vmem:[%s235] sm:$0xff] %vm1388, %v1750
      %1877 = vst.msk [vmem:[%s235 + $0x8] sm:$0xff] %vm1388, %v1753
      %1878 = vst.msk [vmem:[%s235 + $0x10] sm:$0xff] %vm1388, %v1758
      %1879 = vst.msk [vmem:[%s235 + $0x18] sm:$0xff] %vm1388, %v1761
      %1880 = vst.msk [vmem:[%s235 + $0x20] sm:$0xff] %vm1388, %v1766
      %1881 = vst.msk [vmem:[%s235 + $0x28] sm:$0xff] %vm1388, %v1769
      %1882 = vst.msk [vmem:[%s235 + $0x30] sm:$0xff] %vm1388, %v1774
      %1883 = vst.msk [vmem:[%s235 + $0x38] sm:$0xff] %vm1388, %v1777
      %1884 = vst.msk [vmem:[%s235 + $0x40] sm:$0xff] %vm1388, %v1782
      %1885 = vst.msk [vmem:[%s235 + $0x48] sm:$0xff] %vm1388, %v1785
      %1886 = vst.msk [vmem:[%s235 + $0x50] sm:$0xff] %vm1388, %v1790
      %1887 = vst.msk [vmem:[%s235 + $0x58] sm:$0xff] %vm1388, %v1793
      %1888 = vst.msk [vmem:[%s235 + $0x60] sm:$0xff] %vm1388, %v1798
      %1889 = vst.msk [vmem:[%s235 + $0x68] sm:$0xff] %vm1388, %v1801
      %1890 = vst.msk [vmem:[%s235 + $0x70] sm:$0xff] %vm1388, %v1806
      %1891 = vst.msk [vmem:[%s235 + $0x78] sm:$0xff] %vm1388, %v1809
      %1892 = vst.msk [vmem:[%s235 + $0x80] sm:$0xff] %vm1388, %v1814
      %1893 = vst.msk [vmem:[%s235 + $0x88] sm:$0xff] %vm1388, %v1817
      %1894 = vst.msk [vmem:[%s235 + $0x90] sm:$0xff] %vm1388, %v1822
      %1895 = vst.msk [vmem:[%s235 + $0x98] sm:$0xff] %vm1388, %v1825
      %1896 = vst.msk [vmem:[%s235 + $0xa0] sm:$0xff] %vm1388, %v1830
      %1897 = vst.msk [vmem:[%s235 + $0xa8] sm:$0xff] %vm1388, %v1833
      %1898 = vst.msk [vmem:[%s235 + $0xb0] sm:$0xff] %vm1388, %v1838
      %1899 = vst.msk [vmem:[%s235 + $0xb8] sm:$0xff] %vm1388, %v1841
      %1900 = vst.msk [vmem:[%s235 + $0xc0] sm:$0xff] %vm1388, %v1846
      %1901 = vst.msk [vmem:[%s235 + $0xc8] sm:$0xff] %vm1388, %v1849
      %1902 = vst.msk [vmem:[%s235 + $0xd0] sm:$0xff] %vm1388, %v1854
      %1903 = vst.msk [vmem:[%s235 + $0xd8] sm:$0xff] %vm1388, %v1857
      %1904 = vst.msk [vmem:[%s235 + $0xe0] sm:$0xff] %vm1388, %v1862
      %1905 = vst.msk [vmem:[%s235 + $0xe8] sm:$0xff] %vm1388, %v1865
      %1906 = vst.msk [vmem:[%s235 + $0xf0] sm:$0xff] %vm1388, %v1870
      %1907 = vst.msk [vmem:[%s235 + $0xf8] sm:$0xff] %vm1388, %v1873
      %v1908 = vsel %vm1388, %v1750, 0.0
      %v1909 = vsel %vm1388, %v1753, 0.0
      %v1910 = vadd.f32 %v1908, %v1909
      %v1911 = vsel %vm1388, %v1758, 0.0
      %v1912 = vadd.f32 %v1910, %v1911
      %v1913 = vsel %vm1388, %v1761, 0.0
      %v1914 = vadd.f32 %v1912, %v1913
      %v1915 = vsel %vm1388, %v1766, 0.0
      %v1916 = vadd.f32 %v1914, %v1915
      %v1917 = vsel %vm1388, %v1769, 0.0
      %v1918 = vadd.f32 %v1916, %v1917
      %v1919 = vsel %vm1388, %v1774, 0.0
      %v1920 = vadd.f32 %v1918, %v1919
      %v1921 = vsel %vm1388, %v1777, 0.0
      %v1922 = vadd.f32 %v1920, %v1921
      %v1923 = vsel %vm1388, %v1782, 0.0
      %v1924 = vadd.f32 %v1922, %v1923
      %v1925 = vsel %vm1388, %v1785, 0.0
      %v1926 = vadd.f32 %v1924, %v1925
      %v1927 = vsel %vm1388, %v1790, 0.0
      %v1928 = vadd.f32 %v1926, %v1927
      %v1929 = vsel %vm1388, %v1793, 0.0
      %v1930 = vadd.f32 %v1928, %v1929
      %v1931 = vsel %vm1388, %v1798, 0.0
      %v1932 = vadd.f32 %v1930, %v1931
      %v1933 = vsel %vm1388, %v1801, 0.0
      %v1934 = vadd.f32 %v1932, %v1933
      %v1935 = vsel %vm1388, %v1806, 0.0
      %v1936 = vadd.f32 %v1934, %v1935
      %v1937 = vsel %vm1388, %v1809, 0.0
      %v1938 = vadd.f32 %v1936, %v1937
      %v1939 = vsel %vm1388, %v1814, 0.0
      %v1940 = vadd.f32 %v1938, %v1939
      %v1941 = vsel %vm1388, %v1817, 0.0
      %v1942 = vadd.f32 %v1940, %v1941
      %v1943 = vsel %vm1388, %v1822, 0.0
      %v1944 = vadd.f32 %v1942, %v1943
      %v1945 = vsel %vm1388, %v1825, 0.0
      %v1946 = vadd.f32 %v1944, %v1945
      %v1947 = vsel %vm1388, %v1830, 0.0
      %v1948 = vadd.f32 %v1946, %v1947
      %v1949 = vsel %vm1388, %v1833, 0.0
      %v1950 = vadd.f32 %v1948, %v1949
      %v1951 = vsel %vm1388, %v1838, 0.0
      %v1952 = vadd.f32 %v1950, %v1951
      %v1953 = vsel %vm1388, %v1841, 0.0
      %v1954 = vadd.f32 %v1952, %v1953
      %v1955 = vsel %vm1388, %v1846, 0.0
      %v1956 = vadd.f32 %v1954, %v1955
      %v1957 = vsel %vm1388, %v1849, 0.0
      %v1958 = vadd.f32 %v1956, %v1957
      %v1959 = vsel %vm1388, %v1854, 0.0
      %v1960 = vadd.f32 %v1958, %v1959
      %v1961 = vsel %vm1388, %v1857, 0.0
      %v1962 = vadd.f32 %v1960, %v1961
      %v1963 = vsel %vm1388, %v1862, 0.0
      %v1964 = vadd.f32 %v1962, %v1963
      %v1965 = vsel %vm1388, %v1865, 0.0
      %v1966 = vadd.f32 %v1964, %v1965
      %v1967 = vsel %vm1388, %v1870, 0.0
      %v1968 = vadd.f32 %v1966, %v1967
      %v1969 = vsel %vm1388, %v1873, 0.0
      %v1970 = vadd.f32 %v1968, %v1969
      %v1971 = vrot.slane %v1970, 4
      %v1972 = vadd.f32 %v1970, %v1971
      %v1973 = vrot.slane %v1972, 2
      %v1974 = vadd.f32 %v1972, %v1973
      %v1975 = vrot.slane %v1974, 1
      %v1976 = vadd.f32 %v1974, %v1975
      %vm1977 = vcmask 57344
      %1978 = vst.msk [vmem:[%s238] sm:$0x1] %vm1977, %v1976
      %v1979 = vmul.f32 %v1750, %v1750
      %v1980 = vmul.f32 %v1753, %v1753
      %v1981 = vmul.f32 %v1758, %v1758
      %v1982 = vmul.f32 %v1761, %v1761
      %v1983 = vmul.f32 %v1766, %v1766
      %v1984 = vmul.f32 %v1769, %v1769
      %v1985 = vmul.f32 %v1774, %v1774
      %v1986 = vmul.f32 %v1777, %v1777
      %v1987 = vmul.f32 %v1782, %v1782
      %v1988 = vmul.f32 %v1785, %v1785
      %v1989 = vmul.f32 %v1790, %v1790
      %v1990 = vmul.f32 %v1793, %v1793
      %v1991 = vmul.f32 %v1798, %v1798
      %v1992 = vmul.f32 %v1801, %v1801
      %v1993 = vmul.f32 %v1806, %v1806
      %v1994 = vmul.f32 %v1809, %v1809
      %v1995 = vmul.f32 %v1814, %v1814
      %v1996 = vmul.f32 %v1817, %v1817
      %v1997 = vmul.f32 %v1822, %v1822
      %v1998 = vmul.f32 %v1825, %v1825
      %v1999 = vmul.f32 %v1830, %v1830
      %v2000 = vmul.f32 %v1833, %v1833
      %v2001 = vmul.f32 %v1838, %v1838
      %v2002 = vmul.f32 %v1841, %v1841
      %v2003 = vmul.f32 %v1846, %v1846
      %v2004 = vmul.f32 %v1849, %v1849
      %v2005 = vmul.f32 %v1854, %v1854
      %v2006 = vmul.f32 %v1857, %v1857
      %v2007 = vmul.f32 %v1862, %v1862
      %v2008 = vmul.f32 %v1865, %v1865
      %v2009 = vmul.f32 %v1870, %v1870
      %v2010 = vmul.f32 %v1873, %v1873
      %v2011 = vsel %vm1388, %v1979, 0.0
      %v2012 = vsel %vm1388, %v1980, 0.0
      %v2013 = vadd.f32 %v2011, %v2012
      %v2014 = vsel %vm1388, %v1981, 0.0
      %v2015 = vadd.f32 %v2013, %v2014
      %v2016 = vsel %vm1388, %v1982, 0.0
      %v2017 = vadd.f32 %v2015, %v2016
      %v2018 = vsel %vm1388, %v1983, 0.0
      %v2019 = vadd.f32 %v2017, %v2018
      %v2020 = vsel %vm1388, %v1984, 0.0
      %v2021 = vadd.f32 %v2019, %v2020
      %v2022 = vsel %vm1388, %v1985, 0.0
      %v2023 = vadd.f32 %v2021, %v2022
      %v2024 = vsel %vm1388, %v1986, 0.0
      %v2025 = vadd.f32 %v2023, %v2024
      %v2026 = vsel %vm1388, %v1987, 0.0
      %v2027 = vadd.f32 %v2025, %v2026
      %v2028 = vsel %vm1388, %v1988, 0.0
      %v2029 = vadd.f32 %v2027, %v2028
      %v2030 = vsel %vm1388, %v1989, 0.0
      %v2031 = vadd.f32 %v2029, %v2030
      %v2032 = vsel %vm1388, %v1990, 0.0
      %v2033 = vadd.f32 %v2031, %v2032
      %v2034 = vsel %vm1388, %v1991, 0.0
      %v2035 = vadd.f32 %v2033, %v2034
      %v2036 = vsel %vm1388, %v1992, 0.0
      %v2037 = vadd.f32 %v2035, %v2036
      %v2038 = vsel %vm1388, %v1993, 0.0
      %v2039 = vadd.f32 %v2037, %v2038
      %v2040 = vsel %vm1388, %v1994, 0.0
      %v2041 = vadd.f32 %v2039, %v2040
      %v2042 = vsel %vm1388, %v1995, 0.0
      %v2043 = vadd.f32 %v2041, %v2042
      %v2044 = vsel %vm1388, %v1996, 0.0
      %v2045 = vadd.f32 %v2043, %v2044
      %v2046 = vsel %vm1388, %v1997, 0.0
      %v2047 = vadd.f32 %v2045, %v2046
      %v2048 = vsel %vm1388, %v1998, 0.0
      %v2049 = vadd.f32 %v2047, %v2048
      %v2050 = vsel %vm1388, %v1999, 0.0
      %v2051 = vadd.f32 %v2049, %v2050
      %v2052 = vsel %vm1388, %v2000, 0.0
      %v2053 = vadd.f32 %v2051, %v2052
      %v2054 = vsel %vm1388, %v2001, 0.0
      %v2055 = vadd.f32 %v2053, %v2054
      %v2056 = vsel %vm1388, %v2002, 0.0
      %v2057 = vadd.f32 %v2055, %v2056
      %v2058 = vsel %vm1388, %v2003, 0.0
      %v2059 = vadd.f32 %v2057, %v2058
      %v2060 = vsel %vm1388, %v2004, 0.0
      %v2061 = vadd.f32 %v2059, %v2060
      %v2062 = vsel %vm1388, %v2005, 0.0
      %v2063 = vadd.f32 %v2061, %v2062
      %v2064 = vsel %vm1388, %v2006, 0.0
      %v2065 = vadd.f32 %v2063, %v2064
      %v2066 = vsel %vm1388, %v2007, 0.0
      %v2067 = vadd.f32 %v2065, %v2066
      %v2068 = vsel %vm1388, %v2008, 0.0
      %v2069 = vadd.f32 %v2067, %v2068
      %v2070 = vsel %vm1388, %v2009, 0.0
      %v2071 = vadd.f32 %v2069, %v2070
      %v2072 = vsel %vm1388, %v2010, 0.0
      %v2073 = vadd.f32 %v2071, %v2072
      %v2074 = vrot.slane %v2073, 4
      %v2075 = vadd.f32 %v2073, %v2074
      %v2076 = vrot.slane %v2075, 2
      %v2077 = vadd.f32 %v2075, %v2076
      %v2078 = vrot.slane %v2077, 1
      %v2079 = vadd.f32 %v2077, %v2078
      %2080 = vst.msk [vmem:[%s241] sm:$0x1] %vm1977, %v2079
      %p2081 = scmp.lt.s32.totalorder %s17, 1
      %s2082 = scalar_select %p2081, %s17, 1
      %s2083 = smul.addr %s2082, 32
      %s2084 = smul.addr %s2083, 8
      %s2085 = scalar_lea.vmem %s3, %s2084
      %p2086 = scmp.lt.s32.totalorder %s17, 1
      %s2087 = scalar_select %p2086, %s17, 1
      %s2088 = scalar_lea.vmem %s4, %s2087
      %p2089 = scmp.lt.s32.totalorder %s17, 1
      %s2090 = scalar_select %p2089, %s17, 1
      %s2091 = scalar_lea.vmem %s5, %s2090
      // Predicated region
      $region33: #{conv2d_block.2} parent=31 // pred_check
        %p2092 = pneg %p103
      $region34: #{conv2d_block.2} parent=31 // pred_check_branch
        %2094 = sbr.rel (%p2092) target = $region36
      $region35: #{conv2d_block.2} parent=31 // pred_region
        _
      $region36: #{conv2d_block.2} parent=31 // pred_fallthru
        _
      // Predicated region
      $region37: #{conv2d_block.2} parent=31 // pred_check
        %p2095 = pneg %p129
      $region38: #{conv2d_block.2} parent=31 // pred_check_branch
        %2097 = sbr.rel (%p2095) target = $region40
      $region39: #{conv2d_block.2} parent=31 // pred_region
        _
      $region40: #{conv2d_block.2} parent=31 // pred_fallthru
        _
      // Predicated region
      $region41: #{conv2d_block.2} parent=31 // pred_check
        %p2098 = pneg %p155
      $region42: #{conv2d_block.2} parent=31 // pred_check_branch
        %2100 = sbr.rel (%p2098) target = $region44
      $region43: #{conv2d_block.2} parent=31 // pred_region
        _
      $region44: #{conv2d_block.2} parent=31 // pred_fallthru
        _
    $region32: #{conv2d_block.2} parent=5 // pred_fallthru
      _
    %p2101 = scmp.le.s32.totalorder 2, %s12
    // Predicated region
    $region45: #{conv2d_block.2} parent=5 // pred_check
      %p2102 = pneg %p2101
    $region46: #{conv2d_block.2} parent=5 // pred_check_branch
      %2104 = sbr.rel (%p2102) target = $region48
    $region47: #{conv2d_block.2} parent=5 // pred_region
      %s2105 = ssub.s32 %s12, 2
      // Predicated region
      $region49: #{conv2d_block.2} parent=47 // pred_check
        %p2106 = pneg %p109
      $region50: #{conv2d_block.2} parent=47 // pred_check_branch
        %2108 = sbr.rel (%p2106) target = $region52
      $region51: #{conv2d_block.2} parent=47 // pred_region
        %p2109 = scmp.lt.s32.totalorder %s18, 1
        %s2110 = scalar_select %p2109, %s18, 1
        %s2111 = smul.addr %s2110, 32
        %s2112 = smul.addr %s2111, 8
        %s2113 = scalar_lea.vmem %s3, %s2112
      $region52: #{conv2d_block.2} parent=47 // pred_fallthru
        _
      // Predicated region
      $region53: #{conv2d_block.2} parent=47 // pred_check
        %p2114 = pneg %p135
      $region54: #{conv2d_block.2} parent=47 // pred_check_branch
        %2116 = sbr.rel (%p2114) target = $region56
      $region55: #{conv2d_block.2} parent=47 // pred_region
        %p2117 = scmp.lt.s32.totalorder %s18, 1
        %s2118 = scalar_select %p2117, %s18, 1
        %s2119 = scalar_lea.vmem %s4, %s2118
      $region56: #{conv2d_block.2} parent=47 // pred_fallthru
        _
      // Predicated region
      $region57: #{conv2d_block.2} parent=47 // pred_check
        %p2120 = pneg %p161
      $region58: #{conv2d_block.2} parent=47 // pred_check_branch
        %2122 = sbr.rel (%p2120) target = $region60
      $region59: #{conv2d_block.2} parent=47 // pred_region
        %p2123 = scmp.lt.s32.totalorder %s18, 1
        %s2124 = scalar_select %p2123, %s18, 1
        %s2125 = scalar_lea.vmem %s5, %s2124
      $region60: #{conv2d_block.2} parent=47 // pred_fallthru
        _
    $region48: #{conv2d_block.2} parent=5 // pred_fallthru
      _
  $region6: #{conv2d_block.2} parent=0 // loop_footer
    %s16 = sadd.s32 1, %s12
  $region7: #{conv2d_block.2} parent=0 // loop_footer_branch
    %11 = sbr.rel target = $region3
  $region8: #{conv2d_block.2} parent=0 // loop_exit
    _

</llo_original>
